<compile_context>
chip_gen: v5e
topology: v5e:2x2
jax: 0.10.0
libtpu: 0.0.40
codegen_flags: <defaults>
</compile_context>

<pallas_src>
import functools

import jax
import jax.numpy as jnp
from jax import lax
from jax.experimental import pallas as pl
from jax.experimental.pallas import tpu as pltpu


# ----------------------------------------------------------------------------
# Fused WNet kernel (one grid step per block of B images)
# ----------------------------------------------------------------------------
def _wnet_kernel(x_ref, w0_ref, b0_ref, w1_ref, b1_ref, wf_ref, bf_ref,
                 mask_ref, o_ref, a1_ref, a2_ref, *, W, n_filter, B, Mr):
    # x_ref   : (1, 1, L)   bf16 packed zero-padded input slab (Cin = 1)
    # w0_ref  : (nf, 9)     bf16 conv0 weights          b0_ref: (nf, 1) f32
    # w1_ref  : (nf, 9*nf)  bf16 dncnn conv (BN folded) b1_ref: (nf, 1) f32
    # wf_ref  : (1, 9*nf)   bf16 convf weights          bf_ref: (1, 1)  f32
    # mask_ref: (1, B*Mr)   f32, 1 on interior cols, 0 on x-pad junk / k>=M
    # o_ref   : (1, 1, B*Mr) f32 lane-dense output chunks
    # a1_ref, a2_ref : (nf, L) bf16 VMEM-resident activation slabs
    Wp = W + 2
    zpad = Wp + 1              # farthest a 3x3 tap reaches outside a chunk
    A = 128                    # lane-aligned chunk start of image 0
    BMr = B * Mr
    nf = n_filter

    mask = mask_ref[...]       # (1, BMr)

    def tap(src, dy, dx):
        # Lane window of the slab for tap (dy, dx), all B images concatenated
        # along lanes -> (Cin, B*Mr).  `src` is a loaded array or a VMEM ref.
        # Reads past a chunk land in that image's own zero ring, the previous
        # image's masked-zero [M, Mr) tail, or the zero head/guard columns.
        off = A - zpad + dy * Wp + dx
        cols = [src[:, b * Mr + off: b * Mr + off + Mr] for b in range(B)]
        return cols[0] if B == 1 else jnp.concatenate(cols, axis=1)

    def conv_rows(src, w_ref, cin):
        # 3x3 "same" conv as 3 accumulating K=3*cin dots (one per kernel row),
        # keeping only a (3*cin, B*Mr) bf16 sub-slab live at a time.
        acc = None
        for dy in range(3):
            sub = jnp.concatenate([tap(src, dy, dx) for dx in range(3)], axis=0)
            part = jnp.dot(w_ref[:, dy * 3 * cin:(dy + 1) * 3 * cin], sub,
                           preferred_element_type=jnp.float32)
            acc = part if acc is None else acc + part
        return acc                                          # (Cout, BMr) f32

    def store_act(a_ref, h):
        # Aligned stores only: masked bf16 interior chunk + two 128-lane zero
        # columns (head / guard).  The mask re-zeroes the x-pad junk columns
        # and the [M, Mr) tail every step, preserving the zero padding ring
        # the flattened-shift trick relies on.
        zeros = jnp.zeros((nf, A), jnp.bfloat16)
        a_ref[:, :A] = zeros
        a_ref[:, A:A + BMr] = (h * mask).astype(jnp.bfloat16)
        a_ref[:, A + BMr:] = zeros

    x = x_ref[0]                                            # (1, L) bf16

    # ---- conv0 (1 -> nf) + ReLU : one K=9 dot (cin=1 too small to split) ----
    sub9 = jnp.concatenate([tap(x, dy, dx)
                            for dy in range(3) for dx in range(3)], axis=0)
    h = jnp.dot(w0_ref[...], sub9,
                preferred_element_type=jnp.float32) + b0_ref[...]
    store_act(a1_ref, jnp.maximum(h, 0.0))

    # ---- dncnn conv (nf -> nf) + folded eval-mode BatchNorm + ReLU ----------
    h = conv_rows(a1_ref, w1_ref, nf) + b1_ref[...]
    store_act(a2_ref, jnp.maximum(h, 0.0))

    # ---- convf (nf -> 1), no activation; lane-dense (1, B*Mr) store ---------
    o_ref[0] = conv_rows(a2_ref, wf_ref, nf) + bf_ref[...]


# ----------------------------------------------------------------------------
# Parameter init (deterministic, PyTorch-default-style uniform fan-in bounds)
# ----------------------------------------------------------------------------
def init_wnet_params(key, n_filter=32):
    def conv_init(k, cout, cin):
        k_w, k_b = jax.random.split(k)
        bound = 1.0 / jnp.sqrt(cin * 9.0)
        w = jax.random.uniform(k_w, (cout, cin, 3, 3), jnp.float32, -bound, bound)
        b = jax.random.uniform(k_b, (cout,), jnp.float32, -bound, bound)
        return w, b

    k0, k1, k2 = jax.random.split(key, 3)
    w0, b0 = conv_init(k0, n_filter, 1)          # conv0: 1 -> n_filter
    w1, b1 = conv_init(k1, n_filter, n_filter)   # dncnn conv
    wf, bf = conv_init(k2, 1, n_filter)          # convf: n_filter -> 1

    bn = dict(gamma=jnp.ones((n_filter,), jnp.float32),
              beta=jnp.zeros((n_filter,), jnp.float32),
              running_mean=jnp.zeros((n_filter,), jnp.float32),
              running_var=jnp.ones((n_filter,), jnp.float32),
              eps=1e-5)
    return dict(w0=w0, b0=b0, w1=w1, b1=b1, bn=bn, wf=wf, bf=bf)


def _oihw_to_mat(w_oihw):
    # (Cout, Cin, 3, 3) -> (Cout, 9*Cin), column index = (dy*3 + dx)*Cin + ci
    co, ci, kh, kw = w_oihw.shape
    return jnp.transpose(w_oihw, (0, 2, 3, 1)).reshape(co, kh * kw * ci).astype(jnp.float32)


def _round_up(x, m):
    return (x + m - 1) // m * m


def _pick_block_images(n):
    # Largest B in {4, 2, 1} dividing n while keeping >= 2 grid steps
    # (both v7x TensorCores get work); else the largest divisor <= 4.
    for b in (4, 2, 1):
        if n % b == 0 and n // b >= 2:
            return b
    for b in (4, 2, 1):
        if n % b == 0:
            return b
    return 1


# ----------------------------------------------------------------------------
# WNet forward (NCHW in / NCHW out, matching the PyTorch module in eval mode)
# ----------------------------------------------------------------------------
def wnet_forward(x_nchw, params, *, block_images=None):
    N, cin, H, W = x_nchw.shape
    assert cin == 1, "WNet.conv0 expects a single input channel"
    nf = params["w0"].shape[0]
    Hp, Wp = H + 2, W + 2
    M = H * Wp                       # flattened-padded positions covering interior
    zpad = Wp + 1
    A = 128                          # lane-aligned chunk start / head width
    assert zpad <= A, "image width too large for the 128-lane head/guard"
    Mr = _round_up(M + zpad, 128)    # per-image chunk width, lane aligned

    B = block_images if block_images is not None else _pick_block_images(N)
    NP = _round_up(N, B)             # batch padded so B divides it
    NB = NP // B
    BMr = B * Mr
    L = BMr + 2 * A                  # per-block slab width (head + chunks + guard)

    # ---- pack zero-padded inputs into the slab layout (bf16) ----------------
    x = x_nchw[:, 0].astype(jnp.float32)
    xp = jnp.pad(x, ((0, 0), (1, 1), (1, 1)))                    # (N, Hp, Wp)
    chunk = xp.reshape(N, Hp * Wp)[:, zpad:zpad + M]             # (N, M)
    chunk = jnp.pad(chunk, ((0, NP - N), (0, Mr - M)))           # (NP, Mr)
    xslab = jnp.pad(chunk.reshape(NB, BMr), ((0, 0), (A, A)))    # (NB, L)
    xslab = xslab[:, None, :].astype(jnp.bfloat16)               # (NB, 1, L)

    # ---- fold eval-mode BatchNorm into the middle conv ----------------------
    # TODO(synk): training-mode BatchNorm (batch statistics + running-stat
    # updates) is not reproduced; this matches module.eval() semantics.
    bn = params["bn"]
    scale = bn["gamma"] / jnp.sqrt(bn["running_var"] + bn["eps"])
    shift = bn["beta"] - bn["running_mean"] * scale

    w0m = _oihw_to_mat(params["w0"]).astype(jnp.bfloat16)                # (nf, 9)
    b0 = params["b0"].reshape(nf, 1).astype(jnp.float32)
    w1m = (_oihw_to_mat(params["w1"]) * scale[:, None]).astype(jnp.bfloat16)
    b1 = (params["b1"] * scale + shift).reshape(nf, 1).astype(jnp.float32)
    wfm = _oihw_to_mat(params["wf"]).astype(jnp.bfloat16)                # (1, 9*nf)
    bf = params["bf"].reshape(1, 1).astype(jnp.float32)

    # lane mask: 1 on interior columns of each image's chunk; 0 on the x-pad
    # junk columns and on the [M, Mr) alignment tail (keeps the zero ring).
    k = jnp.arange(Mr)
    m1 = ((k < M) & (k % Wp < W)).astype(jnp.float32)
    maskv = jnp.tile(m1, (B,)).reshape(1, BMr)

    kernel = functools.partial(_wnet_kernel, W=W, n_filter=nf, B=B, Mr=Mr)

    out = pl.pallas_call(
        kernel,
        grid=(NB,),
        in_specs=[
            pl.BlockSpec((1, 1, L), lambda n: (n, 0, 0)),        # x slab
            pl.BlockSpec((nf, 9), lambda n: (0, 0)),             # w0
            pl.BlockSpec((nf, 1), lambda n: (0, 0)),             # b0
            pl.BlockSpec((nf, 9 * nf), lambda n: (0, 0)),        # w1 (BN folded)
            pl.BlockSpec((nf, 1), lambda n: (0, 0)),             # b1 (BN folded)
            pl.BlockSpec((1, 9 * nf), lambda n: (0, 0)),         # wf
            pl.BlockSpec((1, 1), lambda n: (0, 0)),              # bf
            pl.BlockSpec((1, BMr), lambda n: (0, 0)),            # mask
        ],
        out_specs=pl.BlockSpec((1, 1, BMr), lambda n: (n, 0, 0)),
        out_shape=jax.ShapeDtypeStruct((NB, 1, BMr), jnp.float32),
        scratch_shapes=[pltpu.VMEM((nf, L), jnp.bfloat16),       # activation 1
                        pltpu.VMEM((nf, L), jnp.bfloat16)],      # activation 2
        compiler_params=pltpu.CompilerParams(
            dimension_semantics=("parallel",)),                  # v7x: 2 TCs
    )(xslab, w0m, b0, w1m, b1, wfm, bf, maskv)

    # drop batch padding, the [M, Mr) tail and the x-padding columns
    out = out.reshape(NP, Mr)[:N, :M].reshape(N, H, Wp)[:, :, :W]
    return out[:, None, :, :]


# ----------------------------------------------------------------------------
# Pure-JAX reference (for correctness check)
# ----------------------------------------------------------------------------
def _conv_ref(x_nchw, w_oihw, b):
    y = lax.conv_general_dilated(x_nchw, w_oihw, (1, 1), ((1, 1), (1, 1)),
                                 dimension_numbers=("NCHW", "OIHW", "NCHW"))
    return y + b.reshape(1, -1, 1, 1)


def wnet_reference(x_nchw, params):
    bn = params["bn"]
    h = jax.nn.relu(_conv_ref(x_nchw, params["w0"], params["b0"]))
    h = _conv_ref(h, params["w1"], params["b1"])
    scale = bn["gamma"] / jnp.sqrt(bn["running_var"] + bn["eps"])
    shift = bn["beta"] - bn["running_mean"] * scale
    h = jax.nn.relu(h * scale.reshape(1, -1, 1, 1) + shift.reshape(1, -1, 1, 1))
    return _conv_ref(h, params["wf"], params["bf"])


# ----------------------------------------------------------------------------
if __name__ == "__main__":
    key = jax.random.PRNGKey(0)
    k_x, k_p, k_x2 = jax.random.split(key, 3)

    params = init_wnet_params(k_p, n_filter=32)

    # batch=2, channels=1 (module input is single-channel), spatial=16
    x = jax.random.normal(k_x, (2, 1, 16, 16), jnp.float32)
    out = jax.block_until_ready(wnet_forward(x, params))
    ref = jax.block_until_ready(wnet_reference(x, params))
    assert out.shape == (2, 1, 16, 16)
    # bf16 MXU operands (f32 accumulate/epilogue) -> keep a ~2e-2 band; a real
    # layout/indexing bug would produce errors of order the signal (~0.1-0.5).
    assert jnp.allclose(out, ref, rtol=2e-2, atol=2e-2), "mismatch vs reference"

    # exercise the multi-image-per-grid-step path: batch=8 -> B=4, grid=(2,)
    x2 = jax.random.normal(k_x2, (8, 1, 16, 16), jnp.float32)
    out2 = jax.block_until_ready(wnet_forward(x2, params))
    ref2 = jax.block_until_ready(wnet_reference(x2, params))
    assert out2.shape == (8, 1, 16, 16)
    assert jnp.allclose(out2, ref2, rtol=2e-2, atol=2e-2), "mismatch (batched)"

    print("KERNEL_OK")
</pallas_src>

<mosaic_0001>
module attributes {stable_mosaic.version = 11 : i64} {
  func.func @_wnet_kernel(%arg0: i32, %arg1: memref<1x1x640xbf16, #tpu.memory_space<vmem>>, %arg2: memref<32x9xbf16, #tpu.memory_space<vmem>>, %arg3: memref<32x1xf32, #tpu.memory_space<vmem>>, %arg4: memref<32x288xbf16, #tpu.memory_space<vmem>>, %arg5: memref<32x1xf32, #tpu.memory_space<vmem>>, %arg6: memref<1x288xbf16, #tpu.memory_space<vmem>>, %arg7: memref<1x1xf32, #tpu.memory_space<vmem>>, %arg8: memref<1x384xf32, #tpu.memory_space<vmem>>, %arg9: memref<1x1x384xf32, #tpu.memory_space<vmem>>, %arg10: memref<32x640xbf16, #tpu.memory_space<vmem>>, %arg11: memref<32x640xbf16, #tpu.memory_space<vmem>>) attributes {dimension_semantics = [#tpu.dimension_semantics<parallel>], iteration_bounds = array<i64: 2>, scalar_prefetch = 0 : i64, scratch_operands = 2 : i64, tpu.core_type = #tpu.core_type<tc>, window_params = [{transform_indices = @transform_0, window_bounds = array<i64: 1, 1, 640>}, {pipeline_mode = #tpu.pipeline_mode<synchronous>, transform_indices = @transform_1, window_bounds = array<i64: 32, 9>}, {pipeline_mode = #tpu.pipeline_mode<synchronous>, transform_indices = @transform_2, window_bounds = array<i64: 32, 1>}, {pipeline_mode = #tpu.pipeline_mode<synchronous>, transform_indices = @transform_3, window_bounds = array<i64: 32, 288>}, {pipeline_mode = #tpu.pipeline_mode<synchronous>, transform_indices = @transform_4, window_bounds = array<i64: 32, 1>}, {pipeline_mode = #tpu.pipeline_mode<synchronous>, transform_indices = @transform_5, window_bounds = array<i64: 1, 288>}, {pipeline_mode = #tpu.pipeline_mode<synchronous>, transform_indices = @transform_6, window_bounds = array<i64: 1, 1>}, {pipeline_mode = #tpu.pipeline_mode<synchronous>, transform_indices = @transform_7, window_bounds = array<i64: 1, 384>}, {transform_indices = @transform_8, window_bounds = array<i64: 1, 1, 384>}]} {
    %c0 = arith.constant 0 : index
    %c0_0 = arith.constant 0 : index
    %0 = vector.load %arg8[%c0, %c0_0] : memref<1x384xf32, #tpu.memory_space<vmem>>, vector<1x384xf32>
    %c0_1 = arith.constant 0 : index
    %c0_2 = arith.constant 0 : index
    %c0_3 = arith.constant 0 : index
    %1 = vector.load %arg1[%c0_1, %c0_2, %c0_3] : memref<1x1x640xbf16, #tpu.memory_space<vmem>>, vector<1x1x640xbf16>
    %2 = vector.shape_cast %1 : vector<1x1x640xbf16> to vector<1x640xbf16>
    %3 = vector.extract_strided_slice %2 {offsets = [0, 109], sizes = [1, 384], strides = [1, 1]} : vector<1x640xbf16> to vector<1x384xbf16>
    %4 = vector.extract_strided_slice %2 {offsets = [0, 110], sizes = [1, 384], strides = [1, 1]} : vector<1x640xbf16> to vector<1x384xbf16>
    %5 = vector.extract_strided_slice %2 {offsets = [0, 111], sizes = [1, 384], strides = [1, 1]} : vector<1x640xbf16> to vector<1x384xbf16>
    %6 = vector.extract_strided_slice %2 {offsets = [0, 127], sizes = [1, 384], strides = [1, 1]} : vector<1x640xbf16> to vector<1x384xbf16>
    %7 = vector.extract_strided_slice %2 {offsets = [0, 128], sizes = [1, 384], strides = [1, 1]} : vector<1x640xbf16> to vector<1x384xbf16>
    %8 = vector.extract_strided_slice %2 {offsets = [0, 129], sizes = [1, 384], strides = [1, 1]} : vector<1x640xbf16> to vector<1x384xbf16>
    %9 = vector.extract_strided_slice %2 {offsets = [0, 145], sizes = [1, 384], strides = [1, 1]} : vector<1x640xbf16> to vector<1x384xbf16>
    %10 = vector.extract_strided_slice %2 {offsets = [0, 146], sizes = [1, 384], strides = [1, 1]} : vector<1x640xbf16> to vector<1x384xbf16>
    %11 = vector.extract_strided_slice %2 {offsets = [0, 147], sizes = [1, 384], strides = [1, 1]} : vector<1x640xbf16> to vector<1x384xbf16>
    %12 = tpu.concatenate %3, %4, %5, %6, %7, %8, %9, %10, %11 in 0 : vector<1x384xbf16>, vector<1x384xbf16>, vector<1x384xbf16>, vector<1x384xbf16>, vector<1x384xbf16>, vector<1x384xbf16>, vector<1x384xbf16>, vector<1x384xbf16>, vector<1x384xbf16> -> vector<9x384xbf16>
    %c0_4 = arith.constant 0 : index
    %c0_5 = arith.constant 0 : index
    %13 = vector.load %arg2[%c0_4, %c0_5] : memref<32x9xbf16, #tpu.memory_space<vmem>>, vector<32x9xbf16>
    %cst = arith.constant dense<0.000000e+00> : vector<32x384xf32>
    %14 = tpu.matmul %13, %12, %cst {dimension_numbers = #tpu.dot_dimension_numbers<[1], [0], [0], [1], [0, 0, 1, 1], [], []>} : vector<32x9xbf16>, vector<9x384xbf16>, vector<32x384xf32> -> vector<32x384xf32>
    %c0_6 = arith.constant 0 : index
    %c0_7 = arith.constant 0 : index
    %15 = vector.load %arg3[%c0_6, %c0_7] : memref<32x1xf32, #tpu.memory_space<vmem>>, vector<32x1xf32>
    %16 = vector.broadcast %15 : vector<32x1xf32> to vector<32x384xf32>
    %17 = arith.addf %14, %16 : vector<32x384xf32>
    %cst_8 = arith.constant 0.000000e+00 : f32
    %18 = vector.broadcast %cst_8 : f32 to vector<32x384xf32>
    %19 = arith.maximumf %17, %18 : vector<32x384xf32>
    %cst_9 = arith.constant 0.000000e+00 : bf16
    %20 = vector.broadcast %cst_9 : bf16 to vector<32x128xbf16>
    %c0_10 = arith.constant 0 : index
    %c0_11 = arith.constant 0 : index
    %21 = vector.load %arg10[%c0_10, %c0_11] : memref<32x640xbf16, #tpu.memory_space<vmem>>, vector<32x128xbf16>
    tpu.vector_store %arg10[%c0_10, %c0_11], %20 {strides = array<i32>} : memref<32x640xbf16, #tpu.memory_space<vmem>>, vector<32x128xbf16>,
    %22 = vector.broadcast %0 : vector<1x384xf32> to vector<32x384xf32>
    %23 = arith.mulf %19, %22 : vector<32x384xf32>
    %24 = arith.truncf %23 : vector<32x384xf32> to vector<32x384xbf16>
    %c0_12 = arith.constant 0 : index
    %c128 = arith.constant 128 : index
    %25 = vector.load %arg10[%c0_12, %c128] : memref<32x640xbf16, #tpu.memory_space<vmem>>, vector<32x384xbf16>
    tpu.vector_store %arg10[%c0_12, %c128], %24 {strides = array<i32>} : memref<32x640xbf16, #tpu.memory_space<vmem>>, vector<32x384xbf16>,
    %c0_13 = arith.constant 0 : index
    %c512 = arith.constant 512 : index
    %26 = vector.load %arg10[%c0_13, %c512] : memref<32x640xbf16, #tpu.memory_space<vmem>>, vector<32x128xbf16>
    tpu.vector_store %arg10[%c0_13, %c512], %20 {strides = array<i32>} : memref<32x640xbf16, #tpu.memory_space<vmem>>, vector<32x128xbf16>,
    %c0_14 = arith.constant 0 : index
    %c109 = arith.constant 109 : index
    %27 = vector.load %arg10[%c0_14, %c109] : memref<32x640xbf16, #tpu.memory_space<vmem>>, vector<32x384xbf16>
    %c0_15 = arith.constant 0 : index
    %c110 = arith.constant 110 : index
    %28 = vector.load %arg10[%c0_15, %c110] : memref<32x640xbf16, #tpu.memory_space<vmem>>, vector<32x384xbf16>
    %c0_16 = arith.constant 0 : index
    %c111 = arith.constant 111 : index
    %29 = vector.load %arg10[%c0_16, %c111] : memref<32x640xbf16, #tpu.memory_space<vmem>>, vector<32x384xbf16>
    %30 = tpu.concatenate %27, %28, %29 in 0 : vector<32x384xbf16>, vector<32x384xbf16>, vector<32x384xbf16> -> vector<96x384xbf16>
    %c0_17 = arith.constant 0 : index
    %c0_18 = arith.constant 0 : index
    %31 = vector.load %arg4[%c0_17, %c0_18] : memref<32x288xbf16, #tpu.memory_space<vmem>>, vector<32x96xbf16>
    %cst_19 = arith.constant dense<0.000000e+00> : vector<32x384xf32>
    %32 = tpu.matmul %31, %30, %cst_19 {dimension_numbers = #tpu.dot_dimension_numbers<[1], [0], [0], [1], [0, 0, 1, 1], [], []>} : vector<32x96xbf16>, vector<96x384xbf16>, vector<32x384xf32> -> vector<32x384xf32>
    %c0_20 = arith.constant 0 : index
    %c127 = arith.constant 127 : index
    %33 = vector.load %arg10[%c0_20, %c127] : memref<32x640xbf16, #tpu.memory_space<vmem>>, vector<32x384xbf16>
    %c0_21 = arith.constant 0 : index
    %c128_22 = arith.constant 128 : index
    %34 = vector.load %arg10[%c0_21, %c128_22] : memref<32x640xbf16, #tpu.memory_space<vmem>>, vector<32x384xbf16>
    %c0_23 = arith.constant 0 : index
    %c129 = arith.constant 129 : index
    %35 = vector.load %arg10[%c0_23, %c129] : memref<32x640xbf16, #tpu.memory_space<vmem>>, vector<32x384xbf16>
    %36 = tpu.concatenate %33, %34, %35 in 0 : vector<32x384xbf16>, vector<32x384xbf16>, vector<32x384xbf16> -> vector<96x384xbf16>
    %c0_24 = arith.constant 0 : index
    %c96 = arith.constant 96 : index
    %37 = vector.load %arg4[%c0_24, %c96] : memref<32x288xbf16, #tpu.memory_space<vmem>>, vector<32x96xbf16>
    %cst_25 = arith.constant dense<0.000000e+00> : vector<32x384xf32>
    %38 = tpu.matmul %37, %36, %cst_25 {dimension_numbers = #tpu.dot_dimension_numbers<[1], [0], [0], [1], [0, 0, 1, 1], [], []>} : vector<32x96xbf16>, vector<96x384xbf16>, vector<32x384xf32> -> vector<32x384xf32>
    %39 = arith.addf %32, %38 : vector<32x384xf32>
    %c0_26 = arith.constant 0 : index
    %c145 = arith.constant 145 : index
    %40 = vector.load %arg10[%c0_26, %c145] : memref<32x640xbf16, #tpu.memory_space<vmem>>, vector<32x384xbf16>
    %c0_27 = arith.constant 0 : index
    %c146 = arith.constant 146 : index
    %41 = vector.load %arg10[%c0_27, %c146] : memref<32x640xbf16, #tpu.memory_space<vmem>>, vector<32x384xbf16>
    %c0_28 = arith.constant 0 : index
    %c147 = arith.constant 147 : index
    %42 = vector.load %arg10[%c0_28, %c147] : memref<32x640xbf16, #tpu.memory_space<vmem>>, vector<32x384xbf16>
    %43 = tpu.concatenate %40, %41, %42 in 0 : vector<32x384xbf16>, vector<32x384xbf16>, vector<32x384xbf16> -> vector<96x384xbf16>
    %c0_29 = arith.constant 0 : index
    %c192 = arith.constant 192 : index
    %44 = vector.load %arg4[%c0_29, %c192] : memref<32x288xbf16, #tpu.memory_space<vmem>>, vector<32x96xbf16>
    %cst_30 = arith.constant dense<0.000000e+00> : vector<32x384xf32>
    %45 = tpu.matmul %44, %43, %cst_30 {dimension_numbers = #tpu.dot_dimension_numbers<[1], [0], [0], [1], [0, 0, 1, 1], [], []>} : vector<32x96xbf16>, vector<96x384xbf16>, vector<32x384xf32> -> vector<32x384xf32>
    %46 = arith.addf %39, %45 : vector<32x384xf32>
    %c0_31 = arith.constant 0 : index
    %c0_32 = arith.constant 0 : index
    %47 = vector.load %arg5[%c0_31, %c0_32] : memref<32x1xf32, #tpu.memory_space<vmem>>, vector<32x1xf32>
    %48 = vector.broadcast %47 : vector<32x1xf32> to vector<32x384xf32>
    %49 = arith.addf %46, %48 : vector<32x384xf32>
    %cst_33 = arith.constant 0.000000e+00 : f32
    %50 = vector.broadcast %cst_33 : f32 to vector<32x384xf32>
    %51 = arith.maximumf %49, %50 : vector<32x384xf32>
    %cst_34 = arith.constant 0.000000e+00 : bf16
    %52 = vector.broadcast %cst_34 : bf16 to vector<32x128xbf16>
    %c0_35 = arith.constant 0 : index
    %c0_36 = arith.constant 0 : index
    %53 = vector.load %arg11[%c0_35, %c0_36] : memref<32x640xbf16, #tpu.memory_space<vmem>>, vector<32x128xbf16>
    tpu.vector_store %arg11[%c0_35, %c0_36], %52 {strides = array<i32>} : memref<32x640xbf16, #tpu.memory_space<vmem>>, vector<32x128xbf16>,
    %54 = vector.broadcast %0 : vector<1x384xf32> to vector<32x384xf32>
    %55 = arith.mulf %51, %54 : vector<32x384xf32>
    %56 = arith.truncf %55 : vector<32x384xf32> to vector<32x384xbf16>
    %c0_37 = arith.constant 0 : index
    %c128_38 = arith.constant 128 : index
    %57 = vector.load %arg11[%c0_37, %c128_38] : memref<32x640xbf16, #tpu.memory_space<vmem>>, vector<32x384xbf16>
    tpu.vector_store %arg11[%c0_37, %c128_38], %56 {strides = array<i32>} : memref<32x640xbf16, #tpu.memory_space<vmem>>, vector<32x384xbf16>,
    %c0_39 = arith.constant 0 : index
    %c512_40 = arith.constant 512 : index
    %58 = vector.load %arg11[%c0_39, %c512_40] : memref<32x640xbf16, #tpu.memory_space<vmem>>, vector<32x128xbf16>
    tpu.vector_store %arg11[%c0_39, %c512_40], %52 {strides = array<i32>} : memref<32x640xbf16, #tpu.memory_space<vmem>>, vector<32x128xbf16>,
    %c0_41 = arith.constant 0 : index
    %c109_42 = arith.constant 109 : index
    %59 = vector.load %arg11[%c0_41, %c109_42] : memref<32x640xbf16, #tpu.memory_space<vmem>>, vector<32x384xbf16>
    %c0_43 = arith.constant 0 : index
    %c110_44 = arith.constant 110 : index
    %60 = vector.load %arg11[%c0_43, %c110_44] : memref<32x640xbf16, #tpu.memory_space<vmem>>, vector<32x384xbf16>
    %c0_45 = arith.constant 0 : index
    %c111_46 = arith.constant 111 : index
    %61 = vector.load %arg11[%c0_45, %c111_46] : memref<32x640xbf16, #tpu.memory_space<vmem>>, vector<32x384xbf16>
    %62 = tpu.concatenate %59, %60, %61 in 0 : vector<32x384xbf16>, vector<32x384xbf16>, vector<32x384xbf16> -> vector<96x384xbf16>
    %c0_47 = arith.constant 0 : index
    %c0_48 = arith.constant 0 : index
    %63 = vector.load %arg6[%c0_47, %c0_48] : memref<1x288xbf16, #tpu.memory_space<vmem>>, vector<1x96xbf16>
    %cst_49 = arith.constant dense<0.000000e+00> : vector<1x384xf32>
    %64 = tpu.matmul %63, %62, %cst_49 {dimension_numbers = #tpu.dot_dimension_numbers<[1], [0], [0], [1], [0, 0, 1, 1], [], []>} : vector<1x96xbf16>, vector<96x384xbf16>, vector<1x384xf32> -> vector<1x384xf32>
    %c0_50 = arith.constant 0 : index
    %c127_51 = arith.constant 127 : index
    %65 = vector.load %arg11[%c0_50, %c127_51] : memref<32x640xbf16, #tpu.memory_space<vmem>>, vector<32x384xbf16>
    %c0_52 = arith.constant 0 : index
    %c128_53 = arith.constant 128 : index
    %66 = vector.load %arg11[%c0_52, %c128_53] : memref<32x640xbf16, #tpu.memory_space<vmem>>, vector<32x384xbf16>
    %c0_54 = arith.constant 0 : index
    %c129_55 = arith.constant 129 : index
    %67 = vector.load %arg11[%c0_54, %c129_55] : memref<32x640xbf16, #tpu.memory_space<vmem>>, vector<32x384xbf16>
    %68 = tpu.concatenate %65, %66, %67 in 0 : vector<32x384xbf16>, vector<32x384xbf16>, vector<32x384xbf16> -> vector<96x384xbf16>
    %c0_56 = arith.constant 0 : index
    %c96_57 = arith.constant 96 : index
    %69 = vector.load %arg6[%c0_56, %c96_57] : memref<1x288xbf16, #tpu.memory_space<vmem>>, vector<1x96xbf16>
    %cst_58 = arith.constant dense<0.000000e+00> : vector<1x384xf32>
    %70 = tpu.matmul %69, %68, %cst_58 {dimension_numbers = #tpu.dot_dimension_numbers<[1], [0], [0], [1], [0, 0, 1, 1], [], []>} : vector<1x96xbf16>, vector<96x384xbf16>, vector<1x384xf32> -> vector<1x384xf32>
    %71 = arith.addf %64, %70 : vector<1x384xf32>
    %c0_59 = arith.constant 0 : index
    %c145_60 = arith.constant 145 : index
    %72 = vector.load %arg11[%c0_59, %c145_60] : memref<32x640xbf16, #tpu.memory_space<vmem>>, vector<32x384xbf16>
    %c0_61 = arith.constant 0 : index
    %c146_62 = arith.constant 146 : index
    %73 = vector.load %arg11[%c0_61, %c146_62] : memref<32x640xbf16, #tpu.memory_space<vmem>>, vector<32x384xbf16>
    %c0_63 = arith.constant 0 : index
    %c147_64 = arith.constant 147 : index
    %74 = vector.load %arg11[%c0_63, %c147_64] : memref<32x640xbf16, #tpu.memory_space<vmem>>, vector<32x384xbf16>
    %75 = tpu.concatenate %72, %73, %74 in 0 : vector<32x384xbf16>, vector<32x384xbf16>, vector<32x384xbf16> -> vector<96x384xbf16>
    %c0_65 = arith.constant 0 : index
    %c192_66 = arith.constant 192 : index
    %76 = vector.load %arg6[%c0_65, %c192_66] : memref<1x288xbf16, #tpu.memory_space<vmem>>, vector<1x96xbf16>
    %cst_67 = arith.constant dense<0.000000e+00> : vector<1x384xf32>
    %77 = tpu.matmul %76, %75, %cst_67 {dimension_numbers = #tpu.dot_dimension_numbers<[1], [0], [0], [1], [0, 0, 1, 1], [], []>} : vector<1x96xbf16>, vector<96x384xbf16>, vector<1x384xf32> -> vector<1x384xf32>
    %78 = arith.addf %71, %77 : vector<1x384xf32>
    %c0_68 = arith.constant 0 : index
    %c0_69 = arith.constant 0 : index
    %79 = vector.load %arg7[%c0_68, %c0_69] : memref<1x1xf32, #tpu.memory_space<vmem>>, vector<1x1xf32>
    %80 = vector.broadcast %79 : vector<1x1xf32> to vector<1x384xf32>
    %81 = arith.addf %78, %80 : vector<1x384xf32>
    %c0_70 = arith.constant 0 : index
    %c0_71 = arith.constant 0 : index
    %c0_72 = arith.constant 0 : index
    %82 = vector.load %arg9[%c0_70, %c0_71, %c0_72] : memref<1x1x384xf32, #tpu.memory_space<vmem>>, vector<1x1x384xf32>
    %83 = vector.shape_cast %82 : vector<1x1x384xf32> to vector<1x384xf32>
    %84 = vector.shape_cast %81 : vector<1x384xf32> to vector<1x1x384xf32>
    tpu.vector_store %arg9[%c0_70, %c0_71, %c0_72], %84 {strides = array<i32>} : memref<1x1x384xf32, #tpu.memory_space<vmem>>, vector<1x1x384xf32>,
    return
  }
  func.func @transform_0(%arg0: i32) -> (i32, i32, i32) {
    %c0_i32 = arith.constant 0 : i32
    %c0_i32_0 = arith.constant 0 : i32
    %c0_i32_1 = arith.constant 0 : i32
    return %arg0, %c0_i32, %c0_i32_0 : i32, i32, i32
  }
  func.func @transform_1(%arg0: i32) -> (i32, i32) {
    %c0_i32 = arith.constant 0 : i32
    %c0_i32_0 = arith.constant 0 : i32
    %c0_i32_1 = arith.constant 0 : i32
    return %c0_i32, %c0_i32_0 : i32, i32
  }
  func.func @transform_2(%arg0: i32) -> (i32, i32) {
    %c0_i32 = arith.constant 0 : i32
    %c0_i32_0 = arith.constant 0 : i32
    %c0_i32_1 = arith.constant 0 : i32
    return %c0_i32, %c0_i32_0 : i32, i32
  }
  func.func @transform_3(%arg0: i32) -> (i32, i32) {
    %c0_i32 = arith.constant 0 : i32
    %c0_i32_0 = arith.constant 0 : i32
    %c0_i32_1 = arith.constant 0 : i32
    return %c0_i32, %c0_i32_0 : i32, i32
  }
  func.func @transform_4(%arg0: i32) -> (i32, i32) {
    %c0_i32 = arith.constant 0 : i32
    %c0_i32_0 = arith.constant 0 : i32
    %c0_i32_1 = arith.constant 0 : i32
    return %c0_i32, %c0_i32_0 : i32, i32
  }
  func.func @transform_5(%arg0: i32) -> (i32, i32) {
    %c0_i32 = arith.constant 0 : i32
    %c0_i32_0 = arith.constant 0 : i32
    %c0_i32_1 = arith.constant 0 : i32
    return %c0_i32, %c0_i32_0 : i32, i32
  }
  func.func @transform_6(%arg0: i32) -> (i32, i32) {
    %c0_i32 = arith.constant 0 : i32
    %c0_i32_0 = arith.constant 0 : i32
    %c0_i32_1 = arith.constant 0 : i32
    return %c0_i32, %c0_i32_0 : i32, i32
  }
  func.func @transform_7(%arg0: i32) -> (i32, i32) {
    %c0_i32 = arith.constant 0 : i32
    %c0_i32_0 = arith.constant 0 : i32
    %c0_i32_1 = arith.constant 0 : i32
    return %c0_i32, %c0_i32_0 : i32, i32
  }
  func.func @transform_8(%arg0: i32) -> (i32, i32, i32) {
    %c0_i32 = arith.constant 0 : i32
    %c0_i32_0 = arith.constant 0 : i32
    %c0_i32_1 = arith.constant 0 : i32
    return %arg0, %c0_i32, %c0_i32_0 : i32, i32, i32
  }
}

</mosaic_0001>

<llo_original>
// kernel: tpu_custom_call.1
$region0: #{tpu_custom_call.1}
  #allocation0 [shape = 'u32[]', space=smem, size = 0x4, offset = 0x4, fixed_abs, tag = 'smem constant byte address 0x4 - core index']
  #allocation1 [shape = 'u32[72,128]{1,0:T(1,128)}', space=vmem, size = 0x9000, scoped, tag = 'internal scratch']
  #allocation2 [shape = 'bf16[32,640]{1,0:T(8,128)(2,1)}', space=vmem, size = 0xa000, scoped, tag = 'scratch operand']
  #allocation3 [shape = 'bf16[32,640]{1,0:T(8,128)(2,1)}', space=vmem, size = 0xa000, scoped, tag = 'scratch operand']
  #allocation4 [shape = 'f32[1,1]{1,0:T(1,128)S(1)}', space=vmem, size = 0x200, scoped, tag = 'scoped memory for tpu_custom_call.1']
  %s0 = inlined_call_operand.vmem [shape: bf16[2,1,640], index: 0, kind: input, shape index: {}]
  %s1 = inlined_call_operand.vmem [shape: bf16[32,9], index: 1, kind: input, shape index: {}]
  %s2 = inlined_call_operand.vmem [shape: f32[32,1], index: 2, kind: input, shape index: {}]
  %s3 = inlined_call_operand.vmem [shape: bf16[32,288], index: 3, kind: input, shape index: {}]
  %s4 = inlined_call_operand.vmem [shape: f32[32,1], index: 4, kind: input, shape index: {}]
  %s5 = inlined_call_operand.vmem [shape: bf16[1,288], index: 5, kind: input, shape index: {}]
  %s6 = inlined_call_operand.<no memory space> [shape: f32[1,1], index: 6, kind: input, shape index: {}]
  %s7 = inlined_call_operand.vmem [shape: f32[1,384], index: 7, kind: input, shape index: {}]
  %s8 = inlined_call_operand.hbm [shape: f32[2,1,384], index: 8, kind: output, shape index: {}]
  %s9 = sld [smem:[#allocation0]]
  $region65: #{tpu_custom_call.1} parent=0
    _
  %s11 = ssub.s32 1, %s9
  %s12 = scalar_select 0, %s11, %s9
  %v13 = vstv %s6
  %14 = vst [vmem:[#allocation4] sm:$0x1] %v13
  $region1: #{tpu_custom_call.1} parent=0
    #allocation5 [shape = 'u8[3072]{0}', space=vmem, size = 0xc00, scoped, tag = 'output window, operand 0']
    #allocation6 [shape = 's32[2]{0}', space=sflag, size = 0x8, scoped, tag = 'scoped memory for tpu_custom_call.1']
    %15 = vsyncpa [#allocation6], 0
    %s16 = scalar_lea.sflag [#allocation6], 1
    %17 = vsyncpa %s16, 0
    loop: start=0, step=1, limit=4
    $region2: #{tpu_custom_call.1} parent=1 // loop_pre_header
      _
    $region3: #{tpu_custom_call.1} parent=1 // loop_header
      %s19 = sphi 0, %s23
      %p20 = scmp.ge.s32.totalorder %s19, 4
      %s29 = sphi 0, %s31
      %s32 = sphi 0, %s29
      %s33 = sphi 0, %s32
      %s49 = sphi 0, %s33
      %s53 = sphi 0, %s53
      %s55 = sphi 0, %s53
      %s56 = sphi 0, %s55
      %s70 = sphi 0, %s56
      %s74 = sphi 0, %s74
      %s76 = sphi 0, %s74
      %s77 = sphi 0, %s76
      %s91 = sphi 0, %s77
      %s95 = sphi 0, %s95
      %s97 = sphi 0, %s95
      %s98 = sphi 0, %s97
      %s112 = sphi 0, %s98
      %s116 = sphi 0, %s116
      %s118 = sphi 0, %s116
      %s119 = sphi 0, %s118
      %s133 = sphi 0, %s119
      %s137 = sphi 0, %s137
      %s139 = sphi 0, %s137
      %s140 = sphi 0, %s139
      %s154 = sphi 0, %s140
      %s158 = sphi 0, %s158
      %s160 = sphi 0, %s158
      %s161 = sphi 0, %s160
      %s175 = sphi 0, %s161
      %s179 = sphi 0, %s179
      %s181 = sphi 0, %s179
      %s182 = sphi 0, %s181
      %s196 = sphi 0, %s182
      %s202 = sphi 0, %s204
      %s205 = sphi 0, %s202
      %s206 = sphi 0, %s205
      %s222 = sphi 0, %s206
    $region4: #{tpu_custom_call.1} parent=1 // loop_header_branch
      %22 = sbr.rel (%p20) target = $region8
    $region5: #{tpu_custom_call.1} parent=1 // loop_body
      %s24 = ssub.s32 %s19, 1
      %s25 = ssub.s32 %s19, 2
      %s26 = sadd.s32 %s19, 1
      %s27 = ssub.s32 %s19, %s26
      %p28 = scmp.eq.s32.totalorder %s27, 0
      %s30 = sadd.s32 %s29, 1
      %s31 = scalar_select %p28, %s29, %s30
      %p34 = pneg %p28
      %p35 = scmp.eq.s32.totalorder %s19, 1
      %p36 = por %p34, %p35
      %p37 = scmp.ne.s32.totalorder %s29, %s32
      %p38 = scmp.eq.s32.totalorder %s19, 0
      %p39 = por %p37, %p38
      %p40 = scmp.ne.s32.totalorder %s29, %s32
      %p41 = scmp.eq.s32.totalorder %s24, 1
      %p42 = por %p40, %p41
      %p43 = scmp.ne.s32.totalorder %s32, %s33
      %p44 = scmp.eq.s32.totalorder %s24, 0
      %p45 = por %p43, %p44
      %p46 = scmp.ne.s32.totalorder %s32, %s33
      %p47 = scmp.eq.s32.totalorder %s25, 1
      %p48 = por %p46, %p47
      %p50 = scmp.ne.s32.totalorder %s33, %s49
      %p51 = scmp.eq.s32.totalorder %s25, 0
      %p52 = por %p50, %p51
      %s54 = sadd.s32 %s53, 1
      %p57 = scmp.eq.s32.totalorder %s19, 1
      %p58 = scmp.ne.s32.totalorder %s53, %s55
      %p59 = scmp.eq.s32.totalorder %s19, 0
      %p60 = por %p58, %p59
      %p61 = scmp.ne.s32.totalorder %s53, %s55
      %p62 = scmp.eq.s32.totalorder %s24, 1
      %p63 = por %p61, %p62
      %p64 = scmp.ne.s32.totalorder %s55, %s56
      %p65 = scmp.eq.s32.totalorder %s24, 0
      %p66 = por %p64, %p65
      %p67 = scmp.ne.s32.totalorder %s55, %s56
      %p68 = scmp.eq.s32.totalorder %s25, 1
      %p69 = por %p67, %p68
      %p71 = scmp.ne.s32.totalorder %s56, %s70
      %p72 = scmp.eq.s32.totalorder %s25, 0
      %p73 = por %p71, %p72
      %s75 = sadd.s32 %s74, 1
      %p78 = scmp.eq.s32.totalorder %s19, 1
      %p79 = scmp.ne.s32.totalorder %s74, %s76
      %p80 = scmp.eq.s32.totalorder %s19, 0
      %p81 = por %p79, %p80
      %p82 = scmp.ne.s32.totalorder %s74, %s76
      %p83 = scmp.eq.s32.totalorder %s24, 1
      %p84 = por %p82, %p83
      %p85 = scmp.ne.s32.totalorder %s76, %s77
      %p86 = scmp.eq.s32.totalorder %s24, 0
      %p87 = por %p85, %p86
      %p88 = scmp.ne.s32.totalorder %s76, %s77
      %p89 = scmp.eq.s32.totalorder %s25, 1
      %p90 = por %p88, %p89
      %p92 = scmp.ne.s32.totalorder %s77, %s91
      %p93 = scmp.eq.s32.totalorder %s25, 0
      %p94 = por %p92, %p93
      %s96 = sadd.s32 %s95, 1
      %p99 = scmp.eq.s32.totalorder %s19, 1
      %p100 = scmp.ne.s32.totalorder %s95, %s97
      %p101 = scmp.eq.s32.totalorder %s19, 0
      %p102 = por %p100, %p101
      %p103 = scmp.ne.s32.totalorder %s95, %s97
      %p104 = scmp.eq.s32.totalorder %s24, 1
      %p105 = por %p103, %p104
      %p106 = scmp.ne.s32.totalorder %s97, %s98
      %p107 = scmp.eq.s32.totalorder %s24, 0
      %p108 = por %p106, %p107
      %p109 = scmp.ne.s32.totalorder %s97, %s98
      %p110 = scmp.eq.s32.totalorder %s25, 1
      %p111 = por %p109, %p110
      %p113 = scmp.ne.s32.totalorder %s98, %s112
      %p114 = scmp.eq.s32.totalorder %s25, 0
      %p115 = por %p113, %p114
      %s117 = sadd.s32 %s116, 1
      %p120 = scmp.eq.s32.totalorder %s19, 1
      %p121 = scmp.ne.s32.totalorder %s116, %s118
      %p122 = scmp.eq.s32.totalorder %s19, 0
      %p123 = por %p121, %p122
      %p124 = scmp.ne.s32.totalorder %s116, %s118
      %p125 = scmp.eq.s32.totalorder %s24, 1
      %p126 = por %p124, %p125
      %p127 = scmp.ne.s32.totalorder %s118, %s119
      %p128 = scmp.eq.s32.totalorder %s24, 0
      %p129 = por %p127, %p128
      %p130 = scmp.ne.s32.totalorder %s118, %s119
      %p131 = scmp.eq.s32.totalorder %s25, 1
      %p132 = por %p130, %p131
      %p134 = scmp.ne.s32.totalorder %s119, %s133
      %p135 = scmp.eq.s32.totalorder %s25, 0
      %p136 = por %p134, %p135
      %s138 = sadd.s32 %s137, 1
      %p141 = scmp.eq.s32.totalorder %s19, 1
      %p142 = scmp.ne.s32.totalorder %s137, %s139
      %p143 = scmp.eq.s32.totalorder %s19, 0
      %p144 = por %p142, %p143
      %p145 = scmp.ne.s32.totalorder %s137, %s139
      %p146 = scmp.eq.s32.totalorder %s24, 1
      %p147 = por %p145, %p146
      %p148 = scmp.ne.s32.totalorder %s139, %s140
      %p149 = scmp.eq.s32.totalorder %s24, 0
      %p150 = por %p148, %p149
      %p151 = scmp.ne.s32.totalorder %s139, %s140
      %p152 = scmp.eq.s32.totalorder %s25, 1
      %p153 = por %p151, %p152
      %p155 = scmp.ne.s32.totalorder %s140, %s154
      %p156 = scmp.eq.s32.totalorder %s25, 0
      %p157 = por %p155, %p156
      %s159 = sadd.s32 %s158, 1
      %p162 = scmp.eq.s32.totalorder %s19, 1
      %p163 = scmp.ne.s32.totalorder %s158, %s160
      %p164 = scmp.eq.s32.totalorder %s19, 0
      %p165 = por %p163, %p164
      %p166 = scmp.ne.s32.totalorder %s158, %s160
      %p167 = scmp.eq.s32.totalorder %s24, 1
      %p168 = por %p166, %p167
      %p169 = scmp.ne.s32.totalorder %s160, %s161
      %p170 = scmp.eq.s32.totalorder %s24, 0
      %p171 = por %p169, %p170
      %p172 = scmp.ne.s32.totalorder %s160, %s161
      %p173 = scmp.eq.s32.totalorder %s25, 1
      %p174 = por %p172, %p173
      %p176 = scmp.ne.s32.totalorder %s161, %s175
      %p177 = scmp.eq.s32.totalorder %s25, 0
      %p178 = por %p176, %p177
      %s180 = sadd.s32 %s179, 1
      %p183 = scmp.eq.s32.totalorder %s19, 1
      %p184 = scmp.ne.s32.totalorder %s179, %s181
      %p185 = scmp.eq.s32.totalorder %s19, 0
      %p186 = por %p184, %p185
      %p187 = scmp.ne.s32.totalorder %s179, %s181
      %p188 = scmp.eq.s32.totalorder %s24, 1
      %p189 = por %p187, %p188
      %p190 = scmp.ne.s32.totalorder %s181, %s182
      %p191 = scmp.eq.s32.totalorder %s24, 0
      %p192 = por %p190, %p191
      %p193 = scmp.ne.s32.totalorder %s181, %s182
      %p194 = scmp.eq.s32.totalorder %s25, 1
      %p195 = por %p193, %p194
      %p197 = scmp.ne.s32.totalorder %s182, %s196
      %p198 = scmp.eq.s32.totalorder %s25, 0
      %p199 = por %p197, %p198
      %s200 = ssub.s32 %s19, %s26
      %p201 = scmp.eq.s32.totalorder %s200, 0
      %s203 = sadd.s32 %s202, 1
      %s204 = scalar_select %p201, %s202, %s203
      %p207 = pneg %p201
      %p208 = scmp.eq.s32.totalorder %s19, 1
      %p209 = por %p207, %p208
      %p210 = scmp.ne.s32.totalorder %s202, %s205
      %p211 = scmp.eq.s32.totalorder %s19, 0
      %p212 = por %p210, %p211
      %p213 = scmp.ne.s32.totalorder %s202, %s205
      %p214 = scmp.eq.s32.totalorder %s24, 1
      %p215 = por %p213, %p214
      %p216 = scmp.ne.s32.totalorder %s205, %s206
      %p217 = scmp.eq.s32.totalorder %s24, 0
      %p218 = por %p216, %p217
      %p219 = scmp.ne.s32.totalorder %s205, %s206
      %p220 = scmp.eq.s32.totalorder %s25, 1
      %p221 = por %p219, %p220
      %p223 = scmp.ne.s32.totalorder %s206, %s222
      %p224 = scmp.eq.s32.totalorder %s25, 0
      %p225 = por %p223, %p224
      %p226 = scmp.le.s32.totalorder 1, %s19
      %p227 = scmp.lt.s32.totalorder %s19, 3
      %p228 = pnand %p226, %p227
      %p229 = pneg %p228
      // Predicated region
      $region9: #{tpu_custom_call.1} parent=5 // pred_check
        _
      $region10: #{tpu_custom_call.1} parent=5 // pred_check_branch
        %231 = sbr.rel (%p228) target = $region12
      $region11: #{tpu_custom_call.1} parent=5 // pred_region
        %s232 = ssub.s32 %s19, 1
        // Predicated region
        $region13: #{tpu_custom_call.1} parent=11 // pred_check
          %p233 = pneg %p66
        $region14: #{tpu_custom_call.1} parent=11 // pred_check_branch
          %235 = sbr.rel (%p233) target = $region16
        $region15: #{tpu_custom_call.1} parent=11 // pred_region
          _
        $region16: #{tpu_custom_call.1} parent=11 // pred_fallthru
          _
        // Predicated region
        $region17: #{tpu_custom_call.1} parent=11 // pred_check
          %p236 = pneg %p87
        $region18: #{tpu_custom_call.1} parent=11 // pred_check_branch
          %238 = sbr.rel (%p236) target = $region20
        $region19: #{tpu_custom_call.1} parent=11 // pred_region
          _
        $region20: #{tpu_custom_call.1} parent=11 // pred_fallthru
          _
        // Predicated region
        $region21: #{tpu_custom_call.1} parent=11 // pred_check
          %p239 = pneg %p108
        $region22: #{tpu_custom_call.1} parent=11 // pred_check_branch
          %241 = sbr.rel (%p239) target = $region24
        $region23: #{tpu_custom_call.1} parent=11 // pred_region
          _
        $region24: #{tpu_custom_call.1} parent=11 // pred_fallthru
          _
        // Predicated region
        $region25: #{tpu_custom_call.1} parent=11 // pred_check
          %p242 = pneg %p129
        $region26: #{tpu_custom_call.1} parent=11 // pred_check_branch
          %244 = sbr.rel (%p242) target = $region28
        $region27: #{tpu_custom_call.1} parent=11 // pred_region
          _
        $region28: #{tpu_custom_call.1} parent=11 // pred_fallthru
          _
        // Predicated region
        $region29: #{tpu_custom_call.1} parent=11 // pred_check
          %p245 = pneg %p150
        $region30: #{tpu_custom_call.1} parent=11 // pred_check_branch
          %247 = sbr.rel (%p245) target = $region32
        $region31: #{tpu_custom_call.1} parent=11 // pred_region
          _
        $region32: #{tpu_custom_call.1} parent=11 // pred_fallthru
          _
        // Predicated region
        $region33: #{tpu_custom_call.1} parent=11 // pred_check
          %p248 = pneg %p171
        $region34: #{tpu_custom_call.1} parent=11 // pred_check_branch
          %250 = sbr.rel (%p248) target = $region36
        $region35: #{tpu_custom_call.1} parent=11 // pred_region
          _
        $region36: #{tpu_custom_call.1} parent=11 // pred_fallthru
          _
        // Predicated region
        $region37: #{tpu_custom_call.1} parent=11 // pred_check
          %p251 = pneg %p192
        $region38: #{tpu_custom_call.1} parent=11 // pred_check_branch
          %253 = sbr.rel (%p251) target = $region40
        $region39: #{tpu_custom_call.1} parent=11 // pred_region
          _
        $region40: #{tpu_custom_call.1} parent=11 // pred_fallthru
          _
      $region12: #{tpu_custom_call.1} parent=5 // pred_fallthru
        _
      %p254 = scmp.lt.s32.totalorder %s19, 2
      // Predicated region
      $region41: #{tpu_custom_call.1} parent=5 // pred_check
        %p255 = pneg %p254
      $region42: #{tpu_custom_call.1} parent=5 // pred_check_branch
        %257 = sbr.rel (%p255) target = $region44
      $region43: #{tpu_custom_call.1} parent=5 // pred_region
        // Predicated region
        $region45: #{tpu_custom_call.1} parent=43 // pred_check
          %p258 = pneg %p39
        $region46: #{tpu_custom_call.1} parent=43 // pred_check_branch
          %260 = sbr.rel (%p258) target = $region48
        $region47: #{tpu_custom_call.1} parent=43 // pred_region
          %p261 = scmp.lt.s32.totalorder %s19, 1
          %s262 = scalar_select %p261, %s19, 1
          %s263 = smul.addr %s262, 5
          %s264 = scalar_lea.vmem %s0, %s263
        $region48: #{tpu_custom_call.1} parent=43 // pred_fallthru
          _
      $region44: #{tpu_custom_call.1} parent=5 // pred_fallthru
        _
      %p265 = scmp.le.s32.totalorder 1, %s19
      %p266 = scmp.lt.s32.totalorder %s19, 3
      %p267 = pnand %p265, %p266
      %p268 = pneg %p267
      // Predicated region
      $region49: #{tpu_custom_call.1} parent=5 // pred_check
        _
      $region50: #{tpu_custom_call.1} parent=5 // pred_check_branch
        %270 = sbr.rel (%p267) target = $region52
      $region51: #{tpu_custom_call.1} parent=5 // pred_region
        %s271 = ssub.s32 %s19, 1
        %p272 = scmp.lt.s32.totalorder %s24, 1
        %s273 = scalar_select %p272, %s24, 1
        %s274 = smul.addr %s273, 5
        %s275 = scalar_lea.vmem %s0, %s274
        %p276 = pneg %p45
        %p277 = pneg %p42
        %p278 = pneg %p66
        %p279 = pneg %p63
        %p280 = pneg %p87
        %p281 = pneg %p84
        %p282 = pneg %p108
        %p283 = pneg %p105
        %p284 = pneg %p129
        %p285 = pneg %p126
        %p286 = pneg %p150
        %p287 = pneg %p147
        %p288 = pneg %p171
        %p289 = pneg %p168
        %p290 = pneg %p192
        %p291 = pneg %p189
        %p292 = pneg %p218
        %p293 = pneg %p215
        %s294 = sand.u32 %s205, 1
        %s295 = scalar_lea.sflag [#allocation6], %s294
        %s296 = sand.u32 %s205, 1
        %s297 = smul.addr %s296, 3
        %s298 = scalar_lea.vmem [#allocation5], %s297
        %p299 = scmp.lt.s32.totalorder %s24, 1
        %s300 = scalar_select %p299, %s24, 1
        %s301 = smul.addr %s300, 5
        %s302 = scalar_lea.vmem %s0, %s301
        %v304 = vld [vmem:[%s7] sm:$0x7]
        %v305 = vld [vmem:[%s302] sm:$0x1f]
        %307 = vst [vmem:[#allocation1] ss:$9 sm:$0xff] %v305
        %v308 = vld [vmem:[#allocation1] sm:$0xff]
        %v309 = vld [vmem:[#allocation1 + $0x9] sm:$0xff]
        %v310 = vld [vmem:[#allocation1 + $0x12] sm:$0xff]
        %v311 = vld [vmem:[#allocation1 + $0x1b] sm:$0xff]
        %316 = vst [vmem:[#allocation1] ss:$9 sm:$0xff] %v305
        %v317 = vld [vmem:[#allocation1] sm:$0xff]
        %v318 = vld [vmem:[#allocation1 + $0x9] sm:$0xff]
        %v319 = vld [vmem:[#allocation1 + $0x12] sm:$0xff]
        %v320 = vld [vmem:[#allocation1 + $0x1b] sm:$0xff]
        %v321 = vshll.u32 %v317, 16
        %v323 = vshll.u32 %v318, 16
        %v325 = vshll.u32 %v319, 16
        %v327 = vshll.u32 %v320, 16
        %329 = vrot.lane.b32.xlu0 %v321, 127
        %v330 = vpop.permute.xlu0 %329
        %331 = vrot.lane.b32.xlu0 %v323, 127
        %v332 = vpop.permute.xlu0 %331
        %333 = vrot.lane.b32.xlu0 %v325, 127
        %v334 = vpop.permute.xlu0 %333
        %335 = vrot.lane.b32.xlu0 %v327, 127
        %v336 = vpop.permute.xlu0 %335
        %vm337 = vcmask 1039360
        %v338 = vsel %vm337, %v330, %v332
        %v339 = vsel %vm337, %v332, %v334
        %v340 = vsel %vm337, %v334, %v336
        %s345 = scalar_lea.vmem [#allocation1], 1
        %346 = vst [vmem:[%s345] ss:$9 sm:$0xff] %v305
        %v347 = vld [vmem:[#allocation1] sm:$0xff]
        %v349 = vld [vmem:[#allocation1 + $0x9] sm:$0xff]
        %v351 = vld [vmem:[#allocation1 + $0x12] sm:$0xff]
        %v353 = vld [vmem:[#allocation1 + $0x1b] sm:$0xff]
        %355 = vrot.lane.b32.xlu0 %v347, 126
        %v356 = vpop.permute.xlu0 %355
        %357 = vrot.lane.b32.xlu0 %v349, 126
        %v358 = vpop.permute.xlu0 %357
        %359 = vrot.lane.b32.xlu0 %v351, 126
        %v360 = vpop.permute.xlu0 %359
        %361 = vrot.lane.b32.xlu0 %v353, 126
        %v362 = vpop.permute.xlu0 %361
        %vm363 = vcmask 1031168
        %v364 = vsel %vm363, %v356, %v358
        %v365 = vsel %vm363, %v358, %v360
        %v366 = vsel %vm363, %v360, %v362
        %367 = vst [vmem:[#allocation1] ss:$9 sm:$0xff] %v305
        %v368 = vld [vmem:[#allocation1] sm:$0xff]
        %v369 = vld [vmem:[#allocation1 + $0x9] sm:$0xff]
        %v370 = vld [vmem:[#allocation1 + $0x12] sm:$0xff]
        %v371 = vld [vmem:[#allocation1 + $0x1b] sm:$0xff]
        %v372 = vshll.u32 %v368, 16
        %v374 = vrot.slane %v372, 7
        %v375 = vshll.u32 %v369, 16
        %v377 = vrot.slane %v375, 7
        %v378 = vshll.u32 %v370, 16
        %v380 = vrot.slane %v378, 7
        %v381 = vshll.u32 %v371, 16
        %v383 = vrot.slane %v381, 7
        %384 = vrot.lane.b32.xlu0 %v374, 110
        %v385 = vpop.permute.xlu0 %384
        %386 = vrot.lane.b32.xlu0 %v377, 110
        %v387 = vpop.permute.xlu0 %386
        %388 = vrot.lane.b32.xlu0 %v380, 110
        %v389 = vpop.permute.xlu0 %388
        %390 = vrot.lane.b32.xlu0 %v383, 110
        %v391 = vpop.permute.xlu0 %390
        %vm392 = vcmask 900096
        %v393 = vsel %vm392, %v385, %v387
        %v394 = vsel %vm392, %v387, %v389
        %v395 = vsel %vm392, %v389, %v391
        %s400 = scalar_lea.vmem [#allocation1], 2
        %401 = vst [vmem:[%s400] ss:$9 sm:$0xff] %v305
        %v402 = vld [vmem:[#allocation1 + $0x9] sm:$0xff]
        %v404 = vld [vmem:[#allocation1 + $0x12] sm:$0xff]
        %v406 = vld [vmem:[#allocation1 + $0x1b] sm:$0xff]
        %408 = vrot.lane.b32.xlu0 %v402, 109
        %v409 = vpop.permute.xlu0 %408
        %410 = vrot.lane.b32.xlu0 %v404, 109
        %v411 = vpop.permute.xlu0 %410
        %412 = vrot.lane.b32.xlu0 %v406, 109
        %v413 = vpop.permute.xlu0 %412
        %vm414 = vcmask 891904
        %v415 = vsel %vm414, %v409, %v411
        %v416 = vsel %vm414, %v411, %v413
        %417 = vst [vmem:[#allocation1] ss:$9 sm:$0xff] %v305
        %v418 = vld [vmem:[#allocation1 + $0x9] sm:$0xff]
        %v419 = vld [vmem:[#allocation1 + $0x12] sm:$0xff]
        %v420 = vld [vmem:[#allocation1 + $0x1b] sm:$0xff]
        %v421 = vld [vmem:[#allocation1 + $0x24] sm:$0xff]
        %v422 = vshll.u32 %v418, 16
        %v424 = vrot.slane %v422, 6
        %v425 = vshll.u32 %v419, 16
        %v427 = vrot.slane %v425, 6
        %v428 = vshll.u32 %v420, 16
        %v430 = vrot.slane %v428, 6
        %v431 = vshll.u32 %v421, 16
        %v433 = vrot.slane %v431, 6
        %434 = vrot.lane.b32.xlu0 %v424, 108
        %v435 = vpop.permute.xlu0 %434
        %436 = vrot.lane.b32.xlu0 %v427, 108
        %v437 = vpop.permute.xlu0 %436
        %438 = vrot.lane.b32.xlu0 %v430, 108
        %v439 = vpop.permute.xlu0 %438
        %440 = vrot.lane.b32.xlu0 %v433, 108
        %v441 = vpop.permute.xlu0 %440
        %vm442 = vcmask 883712
        %v443 = vsel %vm442, %v435, %v437
        %v444 = vsel %vm442, %v437, %v439
        %v445 = vsel %vm442, %v439, %v441
        %s450 = scalar_lea.vmem [#allocation1], 3
        %451 = vst [vmem:[%s450] ss:$9 sm:$0xff] %v305
        %v452 = vld [vmem:[#allocation1 + $0x9] sm:$0xff]
        %v454 = vld [vmem:[#allocation1 + $0x12] sm:$0xff]
        %v456 = vld [vmem:[#allocation1 + $0x1b] sm:$0xff]
        %v458 = vld [vmem:[#allocation1 + $0x24] sm:$0xff]
        %460 = vrot.lane.b32.xlu0 %v452, 92
        %v461 = vpop.permute.xlu0 %460
        %462 = vrot.lane.b32.xlu0 %v454, 92
        %v463 = vpop.permute.xlu0 %462
        %464 = vrot.lane.b32.xlu0 %v456, 92
        %v465 = vpop.permute.xlu0 %464
        %466 = vrot.lane.b32.xlu0 %v458, 92
        %v467 = vpop.permute.xlu0 %466
        %vm468 = vcmask 752640
        %v469 = vsel %vm468, %v461, %v463
        %v470 = vsel %vm468, %v463, %v465
        %v471 = vsel %vm468, %v465, %v467
        %472 = vst [vmem:[#allocation1] ss:$9 sm:$0xff] %v305
        %v473 = vld [vmem:[#allocation1 + $0x9] sm:$0xff]
        %v474 = vld [vmem:[#allocation1 + $0x12] sm:$0xff]
        %v475 = vld [vmem:[#allocation1 + $0x1b] sm:$0xff]
        %v476 = vld [vmem:[#allocation1 + $0x24] sm:$0xff]
        %v477 = vshll.u32 %v473, 16
        %v479 = vrot.slane %v477, 5
        %v480 = vshll.u32 %v474, 16
        %v482 = vrot.slane %v480, 5
        %v483 = vshll.u32 %v475, 16
        %v485 = vrot.slane %v483, 5
        %v486 = vshll.u32 %v476, 16
        %v488 = vrot.slane %v486, 5
        %489 = vrot.lane.b32.xlu0 %v479, 91
        %v490 = vpop.permute.xlu0 %489
        %491 = vrot.lane.b32.xlu0 %v482, 91
        %v492 = vpop.permute.xlu0 %491
        %493 = vrot.lane.b32.xlu0 %v485, 91
        %v494 = vpop.permute.xlu0 %493
        %495 = vrot.lane.b32.xlu0 %v488, 91
        %v496 = vpop.permute.xlu0 %495
        %vm497 = vcmask 744448
        %v498 = vsel %vm497, %v490, %v492
        %v499 = vsel %vm497, %v492, %v494
        %v500 = vsel %vm497, %v494, %v496
        %s505 = scalar_lea.vmem [#allocation1], 4
        %506 = vst [vmem:[%s505] ss:$9 sm:$0xff] %v305
        %v507 = vld [vmem:[#allocation1 + $0x9] sm:$0xff]
        %v509 = vld [vmem:[#allocation1 + $0x12] sm:$0xff]
        %v511 = vld [vmem:[#allocation1 + $0x1b] sm:$0xff]
        %v513 = vld [vmem:[#allocation1 + $0x24] sm:$0xff]
        %515 = vrot.lane.b32.xlu0 %v507, 90
        %v516 = vpop.permute.xlu0 %515
        %517 = vrot.lane.b32.xlu0 %v509, 90
        %v518 = vpop.permute.xlu0 %517
        %519 = vrot.lane.b32.xlu0 %v511, 90
        %v520 = vpop.permute.xlu0 %519
        %521 = vrot.lane.b32.xlu0 %v513, 90
        %v522 = vpop.permute.xlu0 %521
        %vm523 = vcmask 736256
        %v524 = vsel %vm523, %v516, %v518
        %v525 = vsel %vm523, %v518, %v520
        %v526 = vsel %vm523, %v520, %v522
        %vm527 = vcmask 1040384
        %vm528 = vsmask.f32 256
        %vm529 = vmand %vm527, %vm528
        %v530 = vsel %vm529, %v308, %v338
        %v531 = vsel %vm529, %v309, %v339
        %v532 = vsel %vm529, %v310, %v340
        %v533 = vsel %vm529, %v311, %v336
        %vm534 = vcmask 1040384
        %v537 = vsel %vm534, %v530, %v364
        %v541 = vsel %vm534, %v531, %v365
        %v545 = vsel %vm534, %v532, %v366
        %v549 = vsel %vm534, %v533, %v362
        %vm551 = vcmask 1041408
        %vm552 = vsmask.f32 1280
        %vm553 = vmand %vm551, %vm552
        %v554 = vsel %vm553, %v537, %v393
        %v555 = vsel %vm553, %v541, %v394
        %v556 = vsel %vm553, %v545, %v395
        %v557 = vsel %vm553, %v549, %v391
        %vm558 = vcmask 1041408
        %v561 = vsel %vm558, %v554, %v409
        %v565 = vsel %vm558, %v555, %v415
        %v569 = vsel %vm558, %v556, %v416
        %v573 = vsel %vm558, %v557, %v413
        %vm575 = vcmask 1042432
        %vm576 = vsmask.f32 2304
        %vm577 = vmand %vm575, %vm576
        %v578 = vsel %vm577, %v561, %v435
        %v579 = vsel %vm577, %v565, %v443
        %v580 = vsel %vm577, %v569, %v444
        %v581 = vsel %vm577, %v573, %v445
        %vm582 = vcmask 1042432
        %v585 = vsel %vm582, %v578, %v461
        %v589 = vsel %vm582, %v579, %v469
        %v593 = vsel %vm582, %v580, %v470
        %v597 = vsel %vm582, %v581, %v471
        %vm599 = vcmask 1043456
        %vm600 = vsmask.f32 3328
        %vm601 = vmand %vm599, %vm600
        %v602 = vsel %vm601, %v585, %v490
        %v603 = vsel %vm601, %v589, %v498
        %v604 = vsel %vm601, %v593, %v499
        %v605 = vsel %vm601, %v597, %v500
        %vm606 = vcmask 1043456
        %v609 = vsel %vm606, %v602, %v516
        %v612 = vsel %vm606, %v603, %v524
        %v615 = vsel %vm606, %v604, %v525
        %v618 = vsel %vm606, %v605, %v526
        %v619 = vld [vmem:[%s1] sm:$0xf]
        %v620 = vld [vmem:[%s1 + $0x4] sm:$0xf]
        %v621 = vld [vmem:[%s1 + $0x8] sm:$0xf]
        %v622 = vld [vmem:[%s1 + $0xc] sm:$0xf]
        %v623 = vld [vmem:[%s2] sm:$0xff]
        %v624 = vld [vmem:[%s2 + $0x8] sm:$0xff]
        %v625 = vld [vmem:[%s2 + $0x10] sm:$0xff]
        %v626 = vld [vmem:[%s2 + $0x18] sm:$0xff]
        %628 = vset.pattern.permute.xlu0 0
        %629 = vperm.xlu0 %628, %v623
        %v630 = vpop.permute.xlu0 %629
        %633 = vset.pattern.permute.xlu0 0
        %634 = vperm.xlu0 %633, %v624
        %v635 = vpop.permute.xlu0 %634
        %638 = vset.pattern.permute.xlu0 0
        %639 = vperm.xlu0 %638, %v625
        %v640 = vpop.permute.xlu0 %639
        %643 = vset.pattern.permute.xlu0 0
        %644 = vperm.xlu0 %643, %v626
        %v645 = vpop.permute.xlu0 %644
        %v651 = vunpack.c.l.b16 %v619
        %v652 = vunpack.c.l.b16 %v620
        %v653 = vunpack.c.l.b16 %v621
        %v654 = vunpack.c.l.b16 %v622
        %v655 = vpack.c.b16 %v652, %v651
        %v656 = vpack.c.b16 %v654, %v653
        %661 = vrot.lane.b32.xlu0 %v609, 19
        %v662 = vpop.permute.xlu0 %661
        %663 = vrot.lane.b32.xlu0 %v612, 19
        %v664 = vpop.permute.xlu0 %663
        %665 = vrot.lane.b32.xlu0 %v615, 19
        %v666 = vpop.permute.xlu0 %665
        %667 = vrot.lane.b32.xlu0 %v618, 19
        %v668 = vpop.permute.xlu0 %667
        %vm669 = vcmask 154624
        %v670 = vsel %vm669, %v662, %v664
        %v671 = vsel %vm669, %v664, %v666
        %v672 = vsel %vm669, %v666, %v668
        %vm673 = vcmask 72704
        %v675 = vsel %vm673, %v655, 0
        %v678 = vsel %vm673, %v656, 0
        %vm680 = vcmask 1044480
        %v681 = vsel %vm606, 4294967295, 65535
        %v682 = vsel %vm680, %v681, 0
        %v684 = vand.u32 %v670, %v682
        %v687 = vand.u32 %v671, %v682
        %v690 = vand.u32 %v672, %v682
        %692 = vmatpush.bf16.msra.mxu0 0
        %693 = vmatpush.bf16.msra.mxu0 0
        %694 = vmatpush.bf16.msra.mxu0 0
        %695 = vmatpush.bf16.msra.mxu0 0
        %696 = vmatpush.bf16.msra.mxu0 0
        %697 = vmatpush.bf16.msra.mxu0 0
        %698 = vmatpush.bf16.msra.mxu0 0
        %699 = vmatpush.bf16.msra.mxu0 %v684
        %700 = vmatmul.bf16.gmra.mxu0 %v675
        %v701 = vpop.f32.mrf.mxu0
        %v702 = vadd.f32 %v630, %v701
        %v703 = vpop.f32.mrf.mxu0
        %v704 = vadd.f32 %v635, %v703
        %705 = vmatmul.bf16.gmra.mxu0 %v678
        %v706 = vpop.f32.mrf.mxu0
        %v707 = vadd.f32 %v640, %v706
        %v708 = vpop.f32.mrf.mxu0
        %v709 = vadd.f32 %v645, %v708
        %710 = vdwg.mxu0
        %711 = vmatpush.bf16.msra.mxu0 0
        %712 = vmatpush.bf16.msra.mxu0 0
        %713 = vmatpush.bf16.msra.mxu0 0
        %714 = vmatpush.bf16.msra.mxu0 0
        %715 = vmatpush.bf16.msra.mxu0 0
        %716 = vmatpush.bf16.msra.mxu0 0
        %717 = vmatpush.bf16.msra.mxu0 0
        %718 = vmatpush.bf16.msra.mxu0 %v687
        %719 = vmatmul.bf16.gmra.mxu0 %v675
        %v720 = vpop.f32.mrf.mxu0
        %v721 = vadd.f32 %v630, %v720
        %v722 = vpop.f32.mrf.mxu0
        %v723 = vadd.f32 %v635, %v722
        %724 = vmatmul.bf16.gmra.mxu0 %v678
        %v725 = vpop.f32.mrf.mxu0
        %v726 = vadd.f32 %v640, %v725
        %v727 = vpop.f32.mrf.mxu0
        %v728 = vadd.f32 %v645, %v727
        %729 = vdwg.mxu0
        %730 = vmatpush.bf16.msra.mxu0 0
        %731 = vmatpush.bf16.msra.mxu0 0
        %732 = vmatpush.bf16.msra.mxu0 0
        %733 = vmatpush.bf16.msra.mxu0 0
        %734 = vmatpush.bf16.msra.mxu0 0
        %735 = vmatpush.bf16.msra.mxu0 0
        %736 = vmatpush.bf16.msra.mxu0 0
        %737 = vmatpush.bf16.msra.mxu0 %v690
        %738 = vmatmul.bf16.gmra.mxu0 %v675
        %v739 = vpop.f32.mrf.mxu0
        %v740 = vadd.f32 %v630, %v739
        %v741 = vpop.f32.mrf.mxu0
        %v742 = vadd.f32 %v635, %v741
        %743 = vmatmul.bf16.gmra.mxu0 %v678
        %v744 = vpop.f32.mrf.mxu0
        %v745 = vadd.f32 %v640, %v744
        %v746 = vpop.f32.mrf.mxu0
        %v747 = vadd.f32 %v645, %v746
        %748 = vdwg.mxu0
        %v749 = vmax.f32 %v702, 0.0
        %v750 = vmax.f32 %v721, 0.0
        %v751 = vmax.f32 %v740, 0.0
        %v752 = vmax.f32 %v704, 0.0
        %v753 = vmax.f32 %v723, 0.0
        %v754 = vmax.f32 %v742, 0.0
        %v755 = vmax.f32 %v707, 0.0
        %v756 = vmax.f32 %v726, 0.0
        %v757 = vmax.f32 %v745, 0.0
        %v758 = vmax.f32 %v709, 0.0
        %v759 = vmax.f32 %v728, 0.0
        %v760 = vmax.f32 %v747, 0.0
        %761 = vst [vmem:[#allocation2] sm:$0xf] 0
        %762 = vst [vmem:[#allocation2 + $0x14] sm:$0xf] 0
        %763 = vst [vmem:[#allocation2 + $0x28] sm:$0xf] 0
        %764 = vst [vmem:[#allocation2 + $0x3c] sm:$0xf] 0
        %v766 = vperm.slane %v304, 0
        %v767 = vperm.slane %v304, 1
        %v768 = vperm.slane %v304, 2
        %v772 = vmul.f32 %v749, %v766
        %v773 = vmul.f32 %v750, %v767
        %v774 = vmul.f32 %v751, %v768
        %v775 = vmul.f32 %v752, %v766
        %v776 = vmul.f32 %v753, %v767
        %v777 = vmul.f32 %v754, %v768
        %v778 = vmul.f32 %v755, %v766
        %v779 = vmul.f32 %v756, %v767
        %v780 = vmul.f32 %v757, %v768
        %v781 = vmul.f32 %v758, %v766
        %v782 = vmul.f32 %v759, %v767
        %v783 = vmul.f32 %v760, %v768
        %v784 = vpack.c.bf16 %v773, %v772
        %v785 = vpack.c.bf16 %v774, %v774
        %v786 = vpack.c.bf16 %v776, %v775
        %v787 = vpack.c.bf16 %v777, %v777
        %v788 = vpack.c.bf16 %v779, %v778
        %v789 = vpack.c.bf16 %v780, %v780
        %v790 = vpack.c.bf16 %v782, %v781
        %v791 = vpack.c.bf16 %v783, %v783
        %792 = vst [vmem:[#allocation2 + $0x4] sm:$0xff] %v784
        %793 = vst [vmem:[#allocation2 + $0xc] sm:$0xf] %v785
        %794 = vst [vmem:[#allocation2 + $0x18] sm:$0xff] %v786
        %795 = vst [vmem:[#allocation2 + $0x20] sm:$0xf] %v787
        %796 = vst [vmem:[#allocation2 + $0x2c] sm:$0xff] %v788
        %797 = vst [vmem:[#allocation2 + $0x34] sm:$0xf] %v789
        %798 = vst [vmem:[#allocation2 + $0x40] sm:$0xff] %v790
        %799 = vst [vmem:[#allocation2 + $0x48] sm:$0xf] %v791
        %800 = vst [vmem:[#allocation2 + $0x10] sm:$0xf] 0
        %801 = vst [vmem:[#allocation2 + $0x24] sm:$0xf] 0
        %802 = vst [vmem:[#allocation2 + $0x38] sm:$0xf] 0
        %803 = vst [vmem:[#allocation2 + $0x4c] sm:$0xf] 0
        %v804 = vld [vmem:[#allocation2] sm:$0xff]
        %v805 = vld [vmem:[#allocation2 + $0x8] sm:$0xff]
        %v806 = vld [vmem:[#allocation2 + $0x14] sm:$0xff]
        %v807 = vld [vmem:[#allocation2 + $0x1c] sm:$0xff]
        %v808 = vld [vmem:[#allocation2 + $0x28] sm:$0xff]
        %v809 = vld [vmem:[#allocation2 + $0x30] sm:$0xff]
        %v810 = vld [vmem:[#allocation2 + $0x3c] sm:$0xff]
        %v811 = vld [vmem:[#allocation2 + $0x44] sm:$0xff]
        %v820 = vunpack.c.l.b16 %v804
        %v821 = vunpack.c.h.b16 %v804
        %v822 = vunpack.c.l.b16 %v805
        %v823 = vunpack.c.h.b16 %v805
        %v824 = vunpack.c.l.b16 %v806
        %v825 = vunpack.c.h.b16 %v806
        %v826 = vunpack.c.l.b16 %v807
        %v827 = vunpack.c.h.b16 %v807
        %v828 = vunpack.c.l.b16 %v808
        %v829 = vunpack.c.h.b16 %v808
        %v830 = vunpack.c.l.b16 %v809
        %v831 = vunpack.c.h.b16 %v809
        %v832 = vunpack.c.l.b16 %v810
        %v833 = vunpack.c.h.b16 %v810
        %v834 = vunpack.c.l.b16 %v811
        %v835 = vunpack.c.h.b16 %v811
        %v836 = vpack.c.b16 %v824, %v820
        %v837 = vpack.c.b16 %v825, %v821
        %v838 = vpack.c.b16 %v826, %v822
        %v839 = vpack.c.b16 %v827, %v823
        %v840 = vpack.c.b16 %v832, %v828
        %v841 = vpack.c.b16 %v833, %v829
        %v842 = vpack.c.b16 %v834, %v830
        %v843 = vpack.c.b16 %v835, %v831
        %844 = vrot.lane.b32.xlu0 %v836, 127
        %v845 = vpop.permute.xlu0 %844
        %846 = vrot.lane.b32.xlu0 %v837, 127
        %v847 = vpop.permute.xlu0 %846
        %848 = vrot.lane.b32.xlu0 %v838, 127
        %v849 = vpop.permute.xlu0 %848
        %850 = vrot.lane.b32.xlu0 %v839, 127
        %v851 = vpop.permute.xlu0 %850
        %852 = vrot.lane.b32.xlu0 %v840, 127
        %v853 = vpop.permute.xlu0 %852
        %854 = vrot.lane.b32.xlu0 %v841, 127
        %v855 = vpop.permute.xlu0 %854
        %856 = vrot.lane.b32.xlu0 %v842, 127
        %v857 = vpop.permute.xlu0 %856
        %858 = vrot.lane.b32.xlu0 %v843, 127
        %v859 = vpop.permute.xlu0 %858
        %v860 = vsel %vm337, %v845, %v847
        %v861 = vsel %vm337, %v847, %v849
        %v862 = vsel %vm337, %v849, %v851
        %v863 = vsel %vm337, %v853, %v855
        %v864 = vsel %vm337, %v855, %v857
        %v865 = vsel %vm337, %v857, %v859
        %866 = vrot.lane.b32.xlu0 %v836, 126
        %v867 = vpop.permute.xlu0 %866
        %868 = vrot.lane.b32.xlu0 %v837, 126
        %v869 = vpop.permute.xlu0 %868
        %870 = vrot.lane.b32.xlu0 %v838, 126
        %v871 = vpop.permute.xlu0 %870
        %872 = vrot.lane.b32.xlu0 %v839, 126
        %v873 = vpop.permute.xlu0 %872
        %874 = vrot.lane.b32.xlu0 %v840, 126
        %v875 = vpop.permute.xlu0 %874
        %876 = vrot.lane.b32.xlu0 %v841, 126
        %v877 = vpop.permute.xlu0 %876
        %878 = vrot.lane.b32.xlu0 %v842, 126
        %v879 = vpop.permute.xlu0 %878
        %880 = vrot.lane.b32.xlu0 %v843, 126
        %v881 = vpop.permute.xlu0 %880
        %v882 = vsel %vm363, %v867, %v869
        %v883 = vsel %vm363, %v869, %v871
        %v884 = vsel %vm363, %v871, %v873
        %v885 = vsel %vm363, %v875, %v877
        %v886 = vsel %vm363, %v877, %v879
        %v887 = vsel %vm363, %v879, %v881
        %v888 = vld [vmem:[%s3] sm:$0xf]
        %v889 = vld [vmem:[%s3 + $0xc] sm:$0xf]
        %v890 = vld [vmem:[%s3 + $0x18] sm:$0xf]
        %v891 = vld [vmem:[%s3 + $0x24] sm:$0xf]
        %v892 = vld [vmem:[#allocation2 + $0x4] sm:$0xff]
        %v893 = vld [vmem:[#allocation2 + $0xc] sm:$0xf]
        %v894 = vld [vmem:[#allocation2 + $0x18] sm:$0xff]
        %v895 = vld [vmem:[#allocation2 + $0x20] sm:$0xf]
        %v896 = vld [vmem:[#allocation2 + $0x2c] sm:$0xff]
        %v897 = vld [vmem:[#allocation2 + $0x34] sm:$0xf]
        %v898 = vld [vmem:[#allocation2 + $0x40] sm:$0xff]
        %v899 = vld [vmem:[#allocation2 + $0x48] sm:$0xf]
        %v900 = vld [vmem:[#allocation2 + $0x4] sm:$0xff]
        %v901 = vld [vmem:[#allocation2 + $0xc] sm:$0xff]
        %v902 = vld [vmem:[#allocation2 + $0x18] sm:$0xff]
        %v903 = vld [vmem:[#allocation2 + $0x20] sm:$0xff]
        %v904 = vld [vmem:[#allocation2 + $0x2c] sm:$0xff]
        %v905 = vld [vmem:[#allocation2 + $0x34] sm:$0xff]
        %v906 = vld [vmem:[#allocation2 + $0x40] sm:$0xff]
        %v907 = vld [vmem:[#allocation2 + $0x48] sm:$0xff]
        %v916 = vunpack.c.l.b16 %v892
        %v917 = vunpack.c.h.b16 %v892
        %v918 = vunpack.c.l.b16 %v893
        %v919 = vunpack.c.l.b16 %v894
        %v920 = vunpack.c.h.b16 %v894
        %v921 = vunpack.c.l.b16 %v895
        %v922 = vunpack.c.l.b16 %v896
        %v923 = vunpack.c.h.b16 %v896
        %v924 = vunpack.c.l.b16 %v897
        %v925 = vunpack.c.l.b16 %v898
        %v926 = vunpack.c.h.b16 %v898
        %v927 = vunpack.c.l.b16 %v899
        %v928 = vpack.c.b16 %v919, %v916
        %v929 = vpack.c.b16 %v920, %v917
        %v930 = vpack.c.b16 %v921, %v918
        %v931 = vpack.c.b16 %v925, %v922
        %v932 = vpack.c.b16 %v926, %v923
        %v933 = vpack.c.b16 %v927, %v924
        %934 = vrot.lane.b32.xlu0 %v928, 127
        %v935 = vpop.permute.xlu0 %934
        %936 = vrot.lane.b32.xlu0 %v929, 127
        %v937 = vpop.permute.xlu0 %936
        %938 = vrot.lane.b32.xlu0 %v930, 127
        %v939 = vpop.permute.xlu0 %938
        %940 = vrot.lane.b32.xlu0 %v931, 127
        %v941 = vpop.permute.xlu0 %940
        %942 = vrot.lane.b32.xlu0 %v932, 127
        %v943 = vpop.permute.xlu0 %942
        %944 = vrot.lane.b32.xlu0 %v933, 127
        %v945 = vpop.permute.xlu0 %944
        %v946 = vsel %vm337, %v935, %v937
        %v947 = vsel %vm337, %v937, %v939
        %v948 = vsel %vm337, %v941, %v943
        %v949 = vsel %vm337, %v943, %v945
        %v958 = vunpack.c.l.b16 %v900
        %v959 = vunpack.c.h.b16 %v900
        %v960 = vunpack.c.l.b16 %v901
        %v961 = vunpack.c.h.b16 %v901
        %v962 = vunpack.c.l.b16 %v902
        %v963 = vunpack.c.h.b16 %v902
        %v964 = vunpack.c.l.b16 %v903
        %v965 = vunpack.c.h.b16 %v903
        %v966 = vunpack.c.l.b16 %v904
        %v967 = vunpack.c.h.b16 %v904
        %v968 = vunpack.c.l.b16 %v905
        %v969 = vunpack.c.h.b16 %v905
        %v970 = vunpack.c.l.b16 %v906
        %v971 = vunpack.c.h.b16 %v906
        %v972 = vunpack.c.l.b16 %v907
        %v973 = vunpack.c.h.b16 %v907
        %v974 = vpack.c.b16 %v962, %v958
        %v975 = vpack.c.b16 %v963, %v959
        %v976 = vpack.c.b16 %v964, %v960
        %v977 = vpack.c.b16 %v965, %v961
        %v978 = vpack.c.b16 %v970, %v966
        %v979 = vpack.c.b16 %v971, %v967
        %v980 = vpack.c.b16 %v972, %v968
        %v981 = vpack.c.b16 %v973, %v969
        %982 = vrot.lane.b32.xlu0 %v974, 126
        %v983 = vpop.permute.xlu0 %982
        %984 = vrot.lane.b32.xlu0 %v975, 126
        %v985 = vpop.permute.xlu0 %984
        %986 = vrot.lane.b32.xlu0 %v976, 126
        %v987 = vpop.permute.xlu0 %986
        %988 = vrot.lane.b32.xlu0 %v977, 126
        %v989 = vpop.permute.xlu0 %988
        %990 = vrot.lane.b32.xlu0 %v978, 126
        %v991 = vpop.permute.xlu0 %990
        %992 = vrot.lane.b32.xlu0 %v979, 126
        %v993 = vpop.permute.xlu0 %992
        %994 = vrot.lane.b32.xlu0 %v980, 126
        %v995 = vpop.permute.xlu0 %994
        %996 = vrot.lane.b32.xlu0 %v981, 126
        %v997 = vpop.permute.xlu0 %996
        %v998 = vsel %vm363, %v983, %v985
        %v999 = vsel %vm363, %v985, %v987
        %v1000 = vsel %vm363, %v987, %v989
        %v1001 = vsel %vm363, %v991, %v993
        %v1002 = vsel %vm363, %v993, %v995
        %v1003 = vsel %vm363, %v995, %v997
        %v1004 = vld [vmem:[%s3] sm:$0xff]
        %v1005 = vld [vmem:[%s3 + $0xc] sm:$0xff]
        %v1006 = vld [vmem:[%s3 + $0x18] sm:$0xff]
        %v1007 = vld [vmem:[%s3 + $0x24] sm:$0xff]
        %v1012 = vunpack.c.l.b16 %v1004
        %v1013 = vunpack.c.h.b16 %v1004
        %v1014 = vunpack.c.l.b16 %v1005
        %v1015 = vunpack.c.h.b16 %v1005
        %v1016 = vunpack.c.l.b16 %v1006
        %v1017 = vunpack.c.h.b16 %v1006
        %v1018 = vunpack.c.l.b16 %v1007
        %v1019 = vunpack.c.h.b16 %v1007
        %v1020 = vpack.c.b16 %v1014, %v1012
        %v1021 = vpack.c.b16 %v1015, %v1013
        %v1022 = vpack.c.b16 %v1018, %v1016
        %v1023 = vpack.c.b16 %v1019, %v1017
        %1024 = vrot.lane.b32.xlu0 %v1020, 32
        %v1025 = vpop.permute.xlu0 %1024
        %1026 = vrot.lane.b32.xlu0 %v1021, 32
        %v1027 = vpop.permute.xlu0 %1026
        %1028 = vrot.lane.b32.xlu0 %v1022, 32
        %v1029 = vpop.permute.xlu0 %1028
        %1030 = vrot.lane.b32.xlu0 %v1023, 32
        %v1031 = vpop.permute.xlu0 %1030
        %vm1032 = vcmask 261120
        %v1033 = vsel %vm1032, %v1025, %v1027
        %v1034 = vsel %vm1032, %v1029, %v1031
        %1035 = vrot.lane.b32.xlu0 %v836, 1
        %v1036 = vpop.permute.xlu0 %1035
        %1037 = vrot.lane.b32.xlu0 %v837, 1
        %v1038 = vpop.permute.xlu0 %1037
        %1039 = vrot.lane.b32.xlu0 %v838, 1
        %v1040 = vpop.permute.xlu0 %1039
        %1041 = vrot.lane.b32.xlu0 %v839, 1
        %v1042 = vpop.permute.xlu0 %1041
        %1043 = vrot.lane.b32.xlu0 %v840, 1
        %v1044 = vpop.permute.xlu0 %1043
        %1045 = vrot.lane.b32.xlu0 %v841, 1
        %v1046 = vpop.permute.xlu0 %1045
        %1047 = vrot.lane.b32.xlu0 %v842, 1
        %v1048 = vpop.permute.xlu0 %1047
        %1049 = vrot.lane.b32.xlu0 %v843, 1
        %v1050 = vpop.permute.xlu0 %1049
        %1051 = vrot.lane.b32.xlu0 %v935, 1
        %v1052 = vpop.permute.xlu0 %1051
        %1053 = vrot.lane.b32.xlu0 %v946, 1
        %v1054 = vpop.permute.xlu0 %1053
        %1055 = vrot.lane.b32.xlu0 %v947, 1
        %v1056 = vpop.permute.xlu0 %1055
        %1057 = vrot.lane.b32.xlu0 %v939, 1
        %v1058 = vpop.permute.xlu0 %1057
        %1059 = vrot.lane.b32.xlu0 %v941, 1
        %v1060 = vpop.permute.xlu0 %1059
        %1061 = vrot.lane.b32.xlu0 %v948, 1
        %v1062 = vpop.permute.xlu0 %1061
        %1063 = vrot.lane.b32.xlu0 %v949, 1
        %v1064 = vpop.permute.xlu0 %1063
        %1065 = vrot.lane.b32.xlu0 %v945, 1
        %v1066 = vpop.permute.xlu0 %1065
        %1067 = vrot.lane.b32.xlu0 %v983, 1
        %v1068 = vpop.permute.xlu0 %1067
        %1069 = vrot.lane.b32.xlu0 %v998, 1
        %v1070 = vpop.permute.xlu0 %1069
        %1071 = vrot.lane.b32.xlu0 %v999, 1
        %v1072 = vpop.permute.xlu0 %1071
        %1073 = vrot.lane.b32.xlu0 %v1000, 1
        %v1074 = vpop.permute.xlu0 %1073
        %1075 = vrot.lane.b32.xlu0 %v991, 1
        %v1076 = vpop.permute.xlu0 %1075
        %1077 = vrot.lane.b32.xlu0 %v1001, 1
        %v1078 = vpop.permute.xlu0 %1077
        %1079 = vrot.lane.b32.xlu0 %v1002, 1
        %v1080 = vpop.permute.xlu0 %1079
        %1081 = vrot.lane.b32.xlu0 %v1003, 1
        %v1082 = vpop.permute.xlu0 %1081
        %vm1083 = vcmask 7168
        %v1084 = vsel %vm1083, %v1036, %v1038
        %v1085 = vsel %vm1083, %v1038, %v1040
        %v1086 = vsel %vm1083, %v1040, %v1042
        %v1087 = vsel %vm1083, %v1044, %v1046
        %v1088 = vsel %vm1083, %v1046, %v1048
        %v1089 = vsel %vm1083, %v1048, %v1050
        %v1090 = vsel %vm1083, %v1052, %v1054
        %v1091 = vsel %vm1083, %v1054, %v1056
        %v1092 = vsel %vm1083, %v1056, %v1058
        %v1093 = vsel %vm1083, %v1060, %v1062
        %v1094 = vsel %vm1083, %v1062, %v1064
        %v1095 = vsel %vm1083, %v1064, %v1066
        %v1096 = vsel %vm1083, %v1068, %v1070
        %v1097 = vsel %vm1083, %v1070, %v1072
        %v1098 = vsel %vm1083, %v1072, %v1074
        %v1099 = vsel %vm1083, %v1076, %v1078
        %v1100 = vsel %vm1083, %v1078, %v1080
        %v1101 = vsel %vm1083, %v1080, %v1082
        %vm1120 = vcmask 785408
        %v1122 = vsel %vm1120, %v1033, 0
        %v1125 = vsel %vm1120, %v1034, 0
        %1127 = vmatpush.bf16.msra.mxu0 0
        %1128 = vmatpush.bf16.msra.mxu0 0
        %1129 = vmatpush.bf16.msra.mxu0 %v1099
        %1130 = vmatpush.bf16.msra.mxu0 %v1096
        %1131 = vmatpush.bf16.msra.mxu0 %v1093
        %1132 = vmatpush.bf16.msra.mxu0 %v1090
        %1133 = vmatpush.bf16.msra.mxu0 %v1087
        %1134 = vmatpush.bf16.msra.mxu0 %v1084
        %1135 = vmatmul.bf16.gmra.mxu0 %v1122
        %v1136 = vpop.f32.mrf.mxu0
        %v1137 = vadd.f32 0.0, %v1136
        %v1138 = vpop.f32.mrf.mxu0
        %v1139 = vadd.f32 0.0, %v1138
        %1140 = vmatmul.bf16.gmra.mxu0 %v1125
        %v1141 = vpop.f32.mrf.mxu0
        %v1142 = vadd.f32 0.0, %v1141
        %v1143 = vpop.f32.mrf.mxu0
        %v1144 = vadd.f32 0.0, %v1143
        %1145 = vdwg.mxu0
        %1146 = vmatpush.bf16.msra.mxu0 0
        %1147 = vmatpush.bf16.msra.mxu0 0
        %1148 = vmatpush.bf16.msra.mxu0 %v1100
        %1149 = vmatpush.bf16.msra.mxu0 %v1097
        %1150 = vmatpush.bf16.msra.mxu0 %v1094
        %1151 = vmatpush.bf16.msra.mxu0 %v1091
        %1152 = vmatpush.bf16.msra.mxu0 %v1088
        %1153 = vmatpush.bf16.msra.mxu0 %v1085
        %1154 = vmatmul.bf16.gmra.mxu0 %v1122
        %v1155 = vpop.f32.mrf.mxu0
        %v1156 = vadd.f32 0.0, %v1155
        %v1157 = vpop.f32.mrf.mxu0
        %v1158 = vadd.f32 0.0, %v1157
        %1159 = vmatmul.bf16.gmra.mxu0 %v1125
        %v1160 = vpop.f32.mrf.mxu0
        %v1161 = vadd.f32 0.0, %v1160
        %v1162 = vpop.f32.mrf.mxu0
        %v1163 = vadd.f32 0.0, %v1162
        %1164 = vdwg.mxu0
        %1165 = vmatpush.bf16.msra.mxu0 0
        %1166 = vmatpush.bf16.msra.mxu0 0
        %1167 = vmatpush.bf16.msra.mxu0 %v1101
        %1168 = vmatpush.bf16.msra.mxu0 %v1098
        %1169 = vmatpush.bf16.msra.mxu0 %v1095
        %1170 = vmatpush.bf16.msra.mxu0 %v1092
        %1171 = vmatpush.bf16.msra.mxu0 %v1089
        %1172 = vmatpush.bf16.msra.mxu0 %v1086
        %1173 = vmatmul.bf16.gmra.mxu0 %v1122
        %v1174 = vpop.f32.mrf.mxu0
        %v1175 = vadd.f32 0.0, %v1174
        %v1176 = vpop.f32.mrf.mxu0
        %v1177 = vadd.f32 0.0, %v1176
        %1178 = vmatmul.bf16.gmra.mxu0 %v1125
        %v1179 = vpop.f32.mrf.mxu0
        %v1180 = vadd.f32 0.0, %v1179
        %v1181 = vpop.f32.mrf.mxu0
        %v1182 = vadd.f32 0.0, %v1181
        %1183 = vdwg.mxu0
        %v1188 = vunpack.c.l.b16 %v888
        %v1189 = vunpack.c.l.b16 %v889
        %v1190 = vunpack.c.l.b16 %v890
        %v1191 = vunpack.c.l.b16 %v891
        %v1192 = vpack.c.b16 %v1189, %v1188
        %v1193 = vpack.c.b16 %v1191, %v1190
        %1194 = vrot.lane.b32.xlu0 %v836, 19
        %v1195 = vpop.permute.xlu0 %1194
        %1196 = vrot.lane.b32.xlu0 %v837, 19
        %v1197 = vpop.permute.xlu0 %1196
        %1198 = vrot.lane.b32.xlu0 %v838, 19
        %v1199 = vpop.permute.xlu0 %1198
        %1200 = vrot.lane.b32.xlu0 %v839, 19
        %v1201 = vpop.permute.xlu0 %1200
        %1202 = vrot.lane.b32.xlu0 %v840, 19
        %v1203 = vpop.permute.xlu0 %1202
        %1204 = vrot.lane.b32.xlu0 %v841, 19
        %v1205 = vpop.permute.xlu0 %1204
        %1206 = vrot.lane.b32.xlu0 %v842, 19
        %v1207 = vpop.permute.xlu0 %1206
        %1208 = vrot.lane.b32.xlu0 %v843, 19
        %v1209 = vpop.permute.xlu0 %1208
        %1210 = vrot.lane.b32.xlu0 %v860, 19
        %v1211 = vpop.permute.xlu0 %1210
        %1212 = vrot.lane.b32.xlu0 %v861, 19
        %v1213 = vpop.permute.xlu0 %1212
        %1214 = vrot.lane.b32.xlu0 %v862, 19
        %v1215 = vpop.permute.xlu0 %1214
        %1216 = vrot.lane.b32.xlu0 %v851, 19
        %v1217 = vpop.permute.xlu0 %1216
        %1218 = vrot.lane.b32.xlu0 %v863, 19
        %v1219 = vpop.permute.xlu0 %1218
        %1220 = vrot.lane.b32.xlu0 %v864, 19
        %v1221 = vpop.permute.xlu0 %1220
        %1222 = vrot.lane.b32.xlu0 %v865, 19
        %v1223 = vpop.permute.xlu0 %1222
        %1224 = vrot.lane.b32.xlu0 %v859, 19
        %v1225 = vpop.permute.xlu0 %1224
        %1226 = vrot.lane.b32.xlu0 %v882, 19
        %v1227 = vpop.permute.xlu0 %1226
        %1228 = vrot.lane.b32.xlu0 %v883, 19
        %v1229 = vpop.permute.xlu0 %1228
        %1230 = vrot.lane.b32.xlu0 %v884, 19
        %v1231 = vpop.permute.xlu0 %1230
        %1232 = vrot.lane.b32.xlu0 %v873, 19
        %v1233 = vpop.permute.xlu0 %1232
        %1234 = vrot.lane.b32.xlu0 %v885, 19
        %v1235 = vpop.permute.xlu0 %1234
        %1236 = vrot.lane.b32.xlu0 %v886, 19
        %v1237 = vpop.permute.xlu0 %1236
        %1238 = vrot.lane.b32.xlu0 %v887, 19
        %v1239 = vpop.permute.xlu0 %1238
        %1240 = vrot.lane.b32.xlu0 %v881, 19
        %v1241 = vpop.permute.xlu0 %1240
        %v1242 = vsel %vm669, %v1195, %v1197
        %v1243 = vsel %vm669, %v1197, %v1199
        %v1244 = vsel %vm669, %v1199, %v1201
        %v1245 = vsel %vm669, %v1203, %v1205
        %v1246 = vsel %vm669, %v1205, %v1207
        %v1247 = vsel %vm669, %v1207, %v1209
        %v1248 = vsel %vm669, %v1211, %v1213
        %v1249 = vsel %vm669, %v1213, %v1215
        %v1250 = vsel %vm669, %v1215, %v1217
        %v1251 = vsel %vm669, %v1219, %v1221
        %v1252 = vsel %vm669, %v1221, %v1223
        %v1253 = vsel %vm669, %v1223, %v1225
        %v1254 = vsel %vm669, %v1227, %v1229
        %v1255 = vsel %vm669, %v1229, %v1231
        %v1256 = vsel %vm669, %v1231, %v1233
        %v1257 = vsel %vm669, %v1235, %v1237
        %v1258 = vsel %vm669, %v1237, %v1239
        %v1259 = vsel %vm669, %v1239, %v1241
        %v1279 = vsel %vm1120, %v1192, 0
        %v1282 = vsel %vm1120, %v1193, 0
        %1284 = vmatpush.bf16.msra.mxu0 0
        %1285 = vmatpush.bf16.msra.mxu0 0
        %1286 = vmatpush.bf16.msra.mxu0 %v1257
        %1287 = vmatpush.bf16.msra.mxu0 %v1254
        %1288 = vmatpush.bf16.msra.mxu0 %v1251
        %1289 = vmatpush.bf16.msra.mxu0 %v1248
        %1290 = vmatpush.bf16.msra.mxu0 %v1245
        %1291 = vmatpush.bf16.msra.mxu0 %v1242
        %1292 = vmatmul.bf16.gmra.mxu0 %v1279
        %v1293 = vpop.f32.mrf.mxu0
        %v1294 = vadd.f32 %v1137, %v1293
        %v1295 = vpop.f32.mrf.mxu0
        %v1296 = vadd.f32 %v1139, %v1295
        %1297 = vmatmul.bf16.gmra.mxu0 %v1282
        %v1298 = vpop.f32.mrf.mxu0
        %v1299 = vadd.f32 %v1142, %v1298
        %v1300 = vpop.f32.mrf.mxu0
        %v1301 = vadd.f32 %v1144, %v1300
        %1302 = vdwg.mxu0
        %1303 = vmatpush.bf16.msra.mxu0 0
        %1304 = vmatpush.bf16.msra.mxu0 0
        %1305 = vmatpush.bf16.msra.mxu0 %v1258
        %1306 = vmatpush.bf16.msra.mxu0 %v1255
        %1307 = vmatpush.bf16.msra.mxu0 %v1252
        %1308 = vmatpush.bf16.msra.mxu0 %v1249
        %1309 = vmatpush.bf16.msra.mxu0 %v1246
        %1310 = vmatpush.bf16.msra.mxu0 %v1243
        %1311 = vmatmul.bf16.gmra.mxu0 %v1279
        %v1312 = vpop.f32.mrf.mxu0
        %v1313 = vadd.f32 %v1156, %v1312
        %v1314 = vpop.f32.mrf.mxu0
        %v1315 = vadd.f32 %v1158, %v1314
        %1316 = vmatmul.bf16.gmra.mxu0 %v1282
        %v1317 = vpop.f32.mrf.mxu0
        %v1318 = vadd.f32 %v1161, %v1317
        %v1319 = vpop.f32.mrf.mxu0
        %v1320 = vadd.f32 %v1163, %v1319
        %1321 = vdwg.mxu0
        %1322 = vmatpush.bf16.msra.mxu0 0
        %1323 = vmatpush.bf16.msra.mxu0 0
        %1324 = vmatpush.bf16.msra.mxu0 %v1259
        %1325 = vmatpush.bf16.msra.mxu0 %v1256
        %1326 = vmatpush.bf16.msra.mxu0 %v1253
        %1327 = vmatpush.bf16.msra.mxu0 %v1250
        %1328 = vmatpush.bf16.msra.mxu0 %v1247
        %1329 = vmatpush.bf16.msra.mxu0 %v1244
        %1330 = vmatmul.bf16.gmra.mxu0 %v1279
        %v1331 = vpop.f32.mrf.mxu0
        %v1332 = vadd.f32 %v1175, %v1331
        %v1333 = vpop.f32.mrf.mxu0
        %v1334 = vadd.f32 %v1177, %v1333
        %1335 = vmatmul.bf16.gmra.mxu0 %v1282
        %v1336 = vpop.f32.mrf.mxu0
        %v1337 = vadd.f32 %v1180, %v1336
        %v1338 = vpop.f32.mrf.mxu0
        %v1339 = vadd.f32 %v1182, %v1338
        %1340 = vdwg.mxu0
        %1341 = vrot.lane.b32.xlu0 %v974, 127
        %v1342 = vpop.permute.xlu0 %1341
        %1343 = vrot.lane.b32.xlu0 %v975, 127
        %v1344 = vpop.permute.xlu0 %1343
        %1345 = vrot.lane.b32.xlu0 %v976, 127
        %v1346 = vpop.permute.xlu0 %1345
        %1347 = vrot.lane.b32.xlu0 %v977, 127
        %v1348 = vpop.permute.xlu0 %1347
        %1349 = vrot.lane.b32.xlu0 %v978, 127
        %v1350 = vpop.permute.xlu0 %1349
        %1351 = vrot.lane.b32.xlu0 %v979, 127
        %v1352 = vpop.permute.xlu0 %1351
        %1353 = vrot.lane.b32.xlu0 %v980, 127
        %v1354 = vpop.permute.xlu0 %1353
        %1355 = vrot.lane.b32.xlu0 %v981, 127
        %v1356 = vpop.permute.xlu0 %1355
        %v1357 = vsel %vm337, %v1342, %v1344
        %v1358 = vsel %vm337, %v1344, %v1346
        %v1359 = vsel %vm337, %v1346, %v1348
        %v1360 = vsel %vm337, %v1350, %v1352
        %v1361 = vsel %vm337, %v1352, %v1354
        %v1362 = vsel %vm337, %v1354, %v1356
        %v1363 = vld [vmem:[%s3 + $0x4] sm:$0xff]
        %v1364 = vld [vmem:[%s3 + $0x10] sm:$0xff]
        %v1365 = vld [vmem:[%s3 + $0x1c] sm:$0xff]
        %v1366 = vld [vmem:[%s3 + $0x28] sm:$0xff]
        %v1371 = vunpack.c.l.b16 %v1363
        %v1372 = vunpack.c.h.b16 %v1363
        %v1373 = vunpack.c.l.b16 %v1364
        %v1374 = vunpack.c.h.b16 %v1364
        %v1375 = vunpack.c.l.b16 %v1365
        %v1376 = vunpack.c.h.b16 %v1365
        %v1377 = vunpack.c.l.b16 %v1366
        %v1378 = vunpack.c.h.b16 %v1366
        %v1379 = vpack.c.b16 %v1373, %v1371
        %v1380 = vpack.c.b16 %v1374, %v1372
        %v1381 = vpack.c.b16 %v1377, %v1375
        %v1382 = vpack.c.b16 %v1378, %v1376
        %1383 = vrot.lane.b32.xlu0 %v1379, 64
        %v1384 = vpop.permute.xlu0 %1383
        %1385 = vrot.lane.b32.xlu0 %v1380, 64
        %v1386 = vpop.permute.xlu0 %1385
        %1387 = vrot.lane.b32.xlu0 %v1381, 64
        %v1388 = vpop.permute.xlu0 %1387
        %1389 = vrot.lane.b32.xlu0 %v1382, 64
        %v1390 = vpop.permute.xlu0 %1389
        %vm1391 = vcmask 523264
        %v1392 = vsel %vm1391, %v1384, %v1386
        %v1393 = vsel %vm1391, %v1388, %v1390
        %1394 = vrot.lane.b32.xlu0 %v974, 111
        %v1395 = vpop.permute.xlu0 %1394
        %1396 = vrot.lane.b32.xlu0 %v975, 111
        %v1397 = vpop.permute.xlu0 %1396
        %1398 = vrot.lane.b32.xlu0 %v976, 111
        %v1399 = vpop.permute.xlu0 %1398
        %1400 = vrot.lane.b32.xlu0 %v977, 111
        %v1401 = vpop.permute.xlu0 %1400
        %1402 = vrot.lane.b32.xlu0 %v978, 111
        %v1403 = vpop.permute.xlu0 %1402
        %1404 = vrot.lane.b32.xlu0 %v979, 111
        %v1405 = vpop.permute.xlu0 %1404
        %1406 = vrot.lane.b32.xlu0 %v980, 111
        %v1407 = vpop.permute.xlu0 %1406
        %1408 = vrot.lane.b32.xlu0 %v981, 111
        %v1409 = vpop.permute.xlu0 %1408
        %1410 = vrot.lane.b32.xlu0 %v1357, 111
        %v1411 = vpop.permute.xlu0 %1410
        %1412 = vrot.lane.b32.xlu0 %v1358, 111
        %v1413 = vpop.permute.xlu0 %1412
        %1414 = vrot.lane.b32.xlu0 %v1359, 111
        %v1415 = vpop.permute.xlu0 %1414
        %1416 = vrot.lane.b32.xlu0 %v1348, 111
        %v1417 = vpop.permute.xlu0 %1416
        %1418 = vrot.lane.b32.xlu0 %v1360, 111
        %v1419 = vpop.permute.xlu0 %1418
        %1420 = vrot.lane.b32.xlu0 %v1361, 111
        %v1421 = vpop.permute.xlu0 %1420
        %1422 = vrot.lane.b32.xlu0 %v1362, 111
        %v1423 = vpop.permute.xlu0 %1422
        %1424 = vrot.lane.b32.xlu0 %v1356, 111
        %v1425 = vpop.permute.xlu0 %1424
        %1426 = vrot.lane.b32.xlu0 %v998, 111
        %v1427 = vpop.permute.xlu0 %1426
        %1428 = vrot.lane.b32.xlu0 %v999, 111
        %v1429 = vpop.permute.xlu0 %1428
        %1430 = vrot.lane.b32.xlu0 %v1000, 111
        %v1431 = vpop.permute.xlu0 %1430
        %1432 = vrot.lane.b32.xlu0 %v989, 111
        %v1433 = vpop.permute.xlu0 %1432
        %1434 = vrot.lane.b32.xlu0 %v1001, 111
        %v1435 = vpop.permute.xlu0 %1434
        %1436 = vrot.lane.b32.xlu0 %v1002, 111
        %v1437 = vpop.permute.xlu0 %1436
        %1438 = vrot.lane.b32.xlu0 %v1003, 111
        %v1439 = vpop.permute.xlu0 %1438
        %1440 = vrot.lane.b32.xlu0 %v997, 111
        %v1441 = vpop.permute.xlu0 %1440
        %vm1442 = vcmask 908288
        %v1443 = vsel %vm1442, %v1395, %v1397
        %v1444 = vsel %vm1442, %v1397, %v1399
        %v1445 = vsel %vm1442, %v1399, %v1401
        %v1446 = vsel %vm1442, %v1403, %v1405
        %v1447 = vsel %vm1442, %v1405, %v1407
        %v1448 = vsel %vm1442, %v1407, %v1409
        %v1449 = vsel %vm1442, %v1411, %v1413
        %v1450 = vsel %vm1442, %v1413, %v1415
        %v1451 = vsel %vm1442, %v1415, %v1417
        %v1452 = vsel %vm1442, %v1419, %v1421
        %v1453 = vsel %vm1442, %v1421, %v1423
        %v1454 = vsel %vm1442, %v1423, %v1425
        %v1455 = vsel %vm1442, %v1427, %v1429
        %v1456 = vsel %vm1442, %v1429, %v1431
        %v1457 = vsel %vm1442, %v1431, %v1433
        %v1458 = vsel %vm1442, %v1435, %v1437
        %v1459 = vsel %vm1442, %v1437, %v1439
        %v1460 = vsel %vm1442, %v1439, %v1441
        %v1480 = vsel %vm1120, %v1392, 0
        %v1483 = vsel %vm1120, %v1393, 0
        %1485 = vmatpush.bf16.msra.mxu0 0
        %1486 = vmatpush.bf16.msra.mxu0 0
        %1487 = vmatpush.bf16.msra.mxu0 %v1458
        %1488 = vmatpush.bf16.msra.mxu0 %v1455
        %1489 = vmatpush.bf16.msra.mxu0 %v1452
        %1490 = vmatpush.bf16.msra.mxu0 %v1449
        %1491 = vmatpush.bf16.msra.mxu0 %v1446
        %1492 = vmatpush.bf16.msra.mxu0 %v1443
        %1493 = vmatmul.bf16.gmra.mxu0 %v1480
        %v1494 = vpop.f32.mrf.mxu0
        %v1495 = vadd.f32 0.0, %v1494
        %v1496 = vpop.f32.mrf.mxu0
        %v1497 = vadd.f32 0.0, %v1496
        %1498 = vmatmul.bf16.gmra.mxu0 %v1483
        %v1499 = vpop.f32.mrf.mxu0
        %v1500 = vadd.f32 0.0, %v1499
        %v1501 = vpop.f32.mrf.mxu0
        %v1502 = vadd.f32 0.0, %v1501
        %1503 = vdwg.mxu0
        %1504 = vmatpush.bf16.msra.mxu0 0
        %1505 = vmatpush.bf16.msra.mxu0 0
        %1506 = vmatpush.bf16.msra.mxu0 %v1459
        %1507 = vmatpush.bf16.msra.mxu0 %v1456
        %1508 = vmatpush.bf16.msra.mxu0 %v1453
        %1509 = vmatpush.bf16.msra.mxu0 %v1450
        %1510 = vmatpush.bf16.msra.mxu0 %v1447
        %1511 = vmatpush.bf16.msra.mxu0 %v1444
        %1512 = vmatmul.bf16.gmra.mxu0 %v1480
        %v1513 = vpop.f32.mrf.mxu0
        %v1514 = vadd.f32 0.0, %v1513
        %v1515 = vpop.f32.mrf.mxu0
        %v1516 = vadd.f32 0.0, %v1515
        %1517 = vmatmul.bf16.gmra.mxu0 %v1483
        %v1518 = vpop.f32.mrf.mxu0
        %v1519 = vadd.f32 0.0, %v1518
        %v1520 = vpop.f32.mrf.mxu0
        %v1521 = vadd.f32 0.0, %v1520
        %1522 = vdwg.mxu0
        %1523 = vmatpush.bf16.msra.mxu0 0
        %1524 = vmatpush.bf16.msra.mxu0 0
        %1525 = vmatpush.bf16.msra.mxu0 %v1460
        %1526 = vmatpush.bf16.msra.mxu0 %v1457
        %1527 = vmatpush.bf16.msra.mxu0 %v1454
        %1528 = vmatpush.bf16.msra.mxu0 %v1451
        %1529 = vmatpush.bf16.msra.mxu0 %v1448
        %1530 = vmatpush.bf16.msra.mxu0 %v1445
        %1531 = vmatmul.bf16.gmra.mxu0 %v1480
        %v1532 = vpop.f32.mrf.mxu0
        %v1533 = vadd.f32 0.0, %v1532
        %v1534 = vpop.f32.mrf.mxu0
        %v1535 = vadd.f32 0.0, %v1534
        %1536 = vmatmul.bf16.gmra.mxu0 %v1483
        %v1537 = vpop.f32.mrf.mxu0
        %v1538 = vadd.f32 0.0, %v1537
        %v1539 = vpop.f32.mrf.mxu0
        %v1540 = vadd.f32 0.0, %v1539
        %1541 = vdwg.mxu0
        %v1542 = vadd.f32 %v1294, %v1495
        %v1543 = vadd.f32 %v1313, %v1514
        %v1544 = vadd.f32 %v1332, %v1533
        %v1545 = vadd.f32 %v1296, %v1497
        %v1546 = vadd.f32 %v1315, %v1516
        %v1547 = vadd.f32 %v1334, %v1535
        %v1548 = vadd.f32 %v1299, %v1500
        %v1549 = vadd.f32 %v1318, %v1519
        %v1550 = vadd.f32 %v1337, %v1538
        %v1551 = vadd.f32 %v1301, %v1502
        %v1552 = vadd.f32 %v1320, %v1521
        %v1553 = vadd.f32 %v1339, %v1540
        %v1554 = vld [vmem:[%s4] sm:$0xff]
        %v1555 = vld [vmem:[%s4 + $0x8] sm:$0xff]
        %v1556 = vld [vmem:[%s4 + $0x10] sm:$0xff]
        %v1557 = vld [vmem:[%s4 + $0x18] sm:$0xff]
        %1559 = vset.pattern.permute.xlu0 0
        %1560 = vperm.xlu0 %1559, %v1554
        %v1561 = vpop.permute.xlu0 %1560
        %1564 = vset.pattern.permute.xlu0 0
        %1565 = vperm.xlu0 %1564, %v1555
        %v1566 = vpop.permute.xlu0 %1565
        %1569 = vset.pattern.permute.xlu0 0
        %1570 = vperm.xlu0 %1569, %v1556
        %v1571 = vpop.permute.xlu0 %1570
        %1574 = vset.pattern.permute.xlu0 0
        %1575 = vperm.xlu0 %1574, %v1557
        %v1576 = vpop.permute.xlu0 %1575
        %v1578 = vadd.f32 %v1542, %v1561
        %v1579 = vadd.f32 %v1543, %v1561
        %v1580 = vadd.f32 %v1544, %v1561
        %v1581 = vadd.f32 %v1545, %v1566
        %v1582 = vadd.f32 %v1546, %v1566
        %v1583 = vadd.f32 %v1547, %v1566
        %v1584 = vadd.f32 %v1548, %v1571
        %v1585 = vadd.f32 %v1549, %v1571
        %v1586 = vadd.f32 %v1550, %v1571
        %v1587 = vadd.f32 %v1551, %v1576
        %v1588 = vadd.f32 %v1552, %v1576
        %v1589 = vadd.f32 %v1553, %v1576
        %v1590 = vmax.f32 %v1578, 0.0
        %v1591 = vmax.f32 %v1579, 0.0
        %v1592 = vmax.f32 %v1580, 0.0
        %v1593 = vmax.f32 %v1581, 0.0
        %v1594 = vmax.f32 %v1582, 0.0
        %v1595 = vmax.f32 %v1583, 0.0
        %v1596 = vmax.f32 %v1584, 0.0
        %v1597 = vmax.f32 %v1585, 0.0
        %v1598 = vmax.f32 %v1586, 0.0
        %v1599 = vmax.f32 %v1587, 0.0
        %v1600 = vmax.f32 %v1588, 0.0
        %v1601 = vmax.f32 %v1589, 0.0
        %1602 = vst [vmem:[#allocation3] sm:$0xf] 0
        %1603 = vst [vmem:[#allocation3 + $0x14] sm:$0xf] 0
        %1604 = vst [vmem:[#allocation3 + $0x28] sm:$0xf] 0
        %1605 = vst [vmem:[#allocation3 + $0x3c] sm:$0xf] 0
        %v1606 = vmul.f32 %v1590, %v766
        %v1607 = vmul.f32 %v1591, %v767
        %v1608 = vmul.f32 %v1592, %v768
        %v1609 = vmul.f32 %v1593, %v766
        %v1610 = vmul.f32 %v1594, %v767
        %v1611 = vmul.f32 %v1595, %v768
        %v1612 = vmul.f32 %v1596, %v766
        %v1613 = vmul.f32 %v1597, %v767
        %v1614 = vmul.f32 %v1598, %v768
        %v1615 = vmul.f32 %v1599, %v766
        %v1616 = vmul.f32 %v1600, %v767
        %v1617 = vmul.f32 %v1601, %v768
        %v1618 = vpack.c.bf16 %v1607, %v1606
        %v1619 = vpack.c.bf16 %v1608, %v1608
        %v1620 = vpack.c.bf16 %v1610, %v1609
        %v1621 = vpack.c.bf16 %v1611, %v1611
        %v1622 = vpack.c.bf16 %v1613, %v1612
        %v1623 = vpack.c.bf16 %v1614, %v1614
        %v1624 = vpack.c.bf16 %v1616, %v1615
        %v1625 = vpack.c.bf16 %v1617, %v1617
        %1626 = vst [vmem:[#allocation3 + $0x4] sm:$0xff] %v1618
        %1627 = vst [vmem:[#allocation3 + $0xc] sm:$0xf] %v1619
        %1628 = vst [vmem:[#allocation3 + $0x18] sm:$0xff] %v1620
        %1629 = vst [vmem:[#allocation3 + $0x20] sm:$0xf] %v1621
        %1630 = vst [vmem:[#allocation3 + $0x2c] sm:$0xff] %v1622
        %1631 = vst [vmem:[#allocation3 + $0x34] sm:$0xf] %v1623
        %1632 = vst [vmem:[#allocation3 + $0x40] sm:$0xff] %v1624
        %1633 = vst [vmem:[#allocation3 + $0x48] sm:$0xf] %v1625
        %1634 = vst [vmem:[#allocation3 + $0x10] sm:$0xf] 0
        %1635 = vst [vmem:[#allocation3 + $0x24] sm:$0xf] 0
        %1636 = vst [vmem:[#allocation3 + $0x38] sm:$0xf] 0
        %1637 = vst [vmem:[#allocation3 + $0x4c] sm:$0xf] 0
        %v1638 = vld [vmem:[#allocation3] sm:$0xff]
        %v1639 = vld [vmem:[#allocation3 + $0x8] sm:$0xff]
        %v1640 = vld [vmem:[#allocation3 + $0x14] sm:$0xff]
        %v1641 = vld [vmem:[#allocation3 + $0x1c] sm:$0xff]
        %v1642 = vld [vmem:[#allocation3 + $0x28] sm:$0xff]
        %v1643 = vld [vmem:[#allocation3 + $0x30] sm:$0xff]
        %v1644 = vld [vmem:[#allocation3 + $0x3c] sm:$0xff]
        %v1645 = vld [vmem:[#allocation3 + $0x44] sm:$0xff]
        %v1654 = vunpack.c.l.b16 %v1638
        %v1655 = vunpack.c.h.b16 %v1638
        %v1656 = vunpack.c.l.b16 %v1639
        %v1657 = vunpack.c.h.b16 %v1639
        %v1658 = vunpack.c.l.b16 %v1640
        %v1659 = vunpack.c.h.b16 %v1640
        %v1660 = vunpack.c.l.b16 %v1641
        %v1661 = vunpack.c.h.b16 %v1641
        %v1662 = vunpack.c.l.b16 %v1642
        %v1663 = vunpack.c.h.b16 %v1642
        %v1664 = vunpack.c.l.b16 %v1643
        %v1665 = vunpack.c.h.b16 %v1643
        %v1666 = vunpack.c.l.b16 %v1644
        %v1667 = vunpack.c.h.b16 %v1644
        %v1668 = vunpack.c.l.b16 %v1645
        %v1669 = vunpack.c.h.b16 %v1645
        %v1670 = vpack.c.b16 %v1658, %v1654
        %v1671 = vpack.c.b16 %v1659, %v1655
        %v1672 = vpack.c.b16 %v1660, %v1656
        %v1673 = vpack.c.b16 %v1661, %v1657
        %v1674 = vpack.c.b16 %v1666, %v1662
        %v1675 = vpack.c.b16 %v1667, %v1663
        %v1676 = vpack.c.b16 %v1668, %v1664
        %v1677 = vpack.c.b16 %v1669, %v1665
        %1678 = vrot.lane.b32.xlu0 %v1670, 127
        %v1679 = vpop.permute.xlu0 %1678
        %1680 = vrot.lane.b32.xlu0 %v1671, 127
        %v1681 = vpop.permute.xlu0 %1680
        %1682 = vrot.lane.b32.xlu0 %v1672, 127
        %v1683 = vpop.permute.xlu0 %1682
        %1684 = vrot.lane.b32.xlu0 %v1673, 127
        %v1685 = vpop.permute.xlu0 %1684
        %1686 = vrot.lane.b32.xlu0 %v1674, 127
        %v1687 = vpop.permute.xlu0 %1686
        %1688 = vrot.lane.b32.xlu0 %v1675, 127
        %v1689 = vpop.permute.xlu0 %1688
        %1690 = vrot.lane.b32.xlu0 %v1676, 127
        %v1691 = vpop.permute.xlu0 %1690
        %1692 = vrot.lane.b32.xlu0 %v1677, 127
        %v1693 = vpop.permute.xlu0 %1692
        %v1694 = vsel %vm337, %v1679, %v1681
        %v1695 = vsel %vm337, %v1681, %v1683
        %v1696 = vsel %vm337, %v1683, %v1685
        %v1697 = vsel %vm337, %v1687, %v1689
        %v1698 = vsel %vm337, %v1689, %v1691
        %v1699 = vsel %vm337, %v1691, %v1693
        %1700 = vrot.lane.b32.xlu0 %v1670, 126
        %v1701 = vpop.permute.xlu0 %1700
        %1702 = vrot.lane.b32.xlu0 %v1671, 126
        %v1703 = vpop.permute.xlu0 %1702
        %1704 = vrot.lane.b32.xlu0 %v1672, 126
        %v1705 = vpop.permute.xlu0 %1704
        %1706 = vrot.lane.b32.xlu0 %v1673, 126
        %v1707 = vpop.permute.xlu0 %1706
        %1708 = vrot.lane.b32.xlu0 %v1674, 126
        %v1709 = vpop.permute.xlu0 %1708
        %1710 = vrot.lane.b32.xlu0 %v1675, 126
        %v1711 = vpop.permute.xlu0 %1710
        %1712 = vrot.lane.b32.xlu0 %v1676, 126
        %v1713 = vpop.permute.xlu0 %1712
        %1714 = vrot.lane.b32.xlu0 %v1677, 126
        %v1715 = vpop.permute.xlu0 %1714
        %v1716 = vsel %vm363, %v1701, %v1703
        %v1717 = vsel %vm363, %v1703, %v1705
        %v1718 = vsel %vm363, %v1705, %v1707
        %v1719 = vsel %vm363, %v1709, %v1711
        %v1720 = vsel %vm363, %v1711, %v1713
        %v1721 = vsel %vm363, %v1713, %v1715
        %v1722 = vld [vmem:[%s5] sm:$0x1]
        %v1723 = vld [vmem:[#allocation3 + $0x4] sm:$0xff]
        %v1724 = vld [vmem:[#allocation3 + $0xc] sm:$0xf]
        %v1725 = vld [vmem:[#allocation3 + $0x18] sm:$0xff]
        %v1726 = vld [vmem:[#allocation3 + $0x20] sm:$0xf]
        %v1727 = vld [vmem:[#allocation3 + $0x2c] sm:$0xff]
        %v1728 = vld [vmem:[#allocation3 + $0x34] sm:$0xf]
        %v1729 = vld [vmem:[#allocation3 + $0x40] sm:$0xff]
        %v1730 = vld [vmem:[#allocation3 + $0x48] sm:$0xf]
        %v1731 = vld [vmem:[#allocation3 + $0x4] sm:$0xff]
        %v1732 = vld [vmem:[#allocation3 + $0xc] sm:$0xff]
        %v1733 = vld [vmem:[#allocation3 + $0x18] sm:$0xff]
        %v1734 = vld [vmem:[#allocation3 + $0x20] sm:$0xff]
        %v1735 = vld [vmem:[#allocation3 + $0x2c] sm:$0xff]
        %v1736 = vld [vmem:[#allocation3 + $0x34] sm:$0xff]
        %v1737 = vld [vmem:[#allocation3 + $0x40] sm:$0xff]
        %v1738 = vld [vmem:[#allocation3 + $0x48] sm:$0xff]
        %v1747 = vunpack.c.l.b16 %v1723
        %v1748 = vunpack.c.h.b16 %v1723
        %v1749 = vunpack.c.l.b16 %v1724
        %v1750 = vunpack.c.l.b16 %v1725
        %v1751 = vunpack.c.h.b16 %v1725
        %v1752 = vunpack.c.l.b16 %v1726
        %v1753 = vunpack.c.l.b16 %v1727
        %v1754 = vunpack.c.h.b16 %v1727
        %v1755 = vunpack.c.l.b16 %v1728
        %v1756 = vunpack.c.l.b16 %v1729
        %v1757 = vunpack.c.h.b16 %v1729
        %v1758 = vunpack.c.l.b16 %v1730
        %v1759 = vpack.c.b16 %v1750, %v1747
        %v1760 = vpack.c.b16 %v1751, %v1748
        %v1761 = vpack.c.b16 %v1752, %v1749
        %v1762 = vpack.c.b16 %v1756, %v1753
        %v1763 = vpack.c.b16 %v1757, %v1754
        %v1764 = vpack.c.b16 %v1758, %v1755
        %1765 = vrot.lane.b32.xlu0 %v1759, 127
        %v1766 = vpop.permute.xlu0 %1765
        %1767 = vrot.lane.b32.xlu0 %v1760, 127
        %v1768 = vpop.permute.xlu0 %1767
        %1769 = vrot.lane.b32.xlu0 %v1761, 127
        %v1770 = vpop.permute.xlu0 %1769
        %1771 = vrot.lane.b32.xlu0 %v1762, 127
        %v1772 = vpop.permute.xlu0 %1771
        %1773 = vrot.lane.b32.xlu0 %v1763, 127
        %v1774 = vpop.permute.xlu0 %1773
        %1775 = vrot.lane.b32.xlu0 %v1764, 127
        %v1776 = vpop.permute.xlu0 %1775
        %v1777 = vsel %vm337, %v1766, %v1768
        %v1778 = vsel %vm337, %v1768, %v1770
        %v1779 = vsel %vm337, %v1772, %v1774
        %v1780 = vsel %vm337, %v1774, %v1776
        %v1789 = vunpack.c.l.b16 %v1731
        %v1790 = vunpack.c.h.b16 %v1731
        %v1791 = vunpack.c.l.b16 %v1732
        %v1792 = vunpack.c.h.b16 %v1732
        %v1793 = vunpack.c.l.b16 %v1733
        %v1794 = vunpack.c.h.b16 %v1733
        %v1795 = vunpack.c.l.b16 %v1734
        %v1796 = vunpack.c.h.b16 %v1734
        %v1797 = vunpack.c.l.b16 %v1735
        %v1798 = vunpack.c.h.b16 %v1735
        %v1799 = vunpack.c.l.b16 %v1736
        %v1800 = vunpack.c.h.b16 %v1736
        %v1801 = vunpack.c.l.b16 %v1737
        %v1802 = vunpack.c.h.b16 %v1737
        %v1803 = vunpack.c.l.b16 %v1738
        %v1804 = vunpack.c.h.b16 %v1738
        %v1805 = vpack.c.b16 %v1793, %v1789
        %v1806 = vpack.c.b16 %v1794, %v1790
        %v1807 = vpack.c.b16 %v1795, %v1791
        %v1808 = vpack.c.b16 %v1796, %v1792
        %v1809 = vpack.c.b16 %v1801, %v1797
        %v1810 = vpack.c.b16 %v1802, %v1798
        %v1811 = vpack.c.b16 %v1803, %v1799
        %v1812 = vpack.c.b16 %v1804, %v1800
        %1813 = vrot.lane.b32.xlu0 %v1805, 126
        %v1814 = vpop.permute.xlu0 %1813
        %1815 = vrot.lane.b32.xlu0 %v1806, 126
        %v1816 = vpop.permute.xlu0 %1815
        %1817 = vrot.lane.b32.xlu0 %v1807, 126
        %v1818 = vpop.permute.xlu0 %1817
        %1819 = vrot.lane.b32.xlu0 %v1808, 126
        %v1820 = vpop.permute.xlu0 %1819
        %1821 = vrot.lane.b32.xlu0 %v1809, 126
        %v1822 = vpop.permute.xlu0 %1821
        %1823 = vrot.lane.b32.xlu0 %v1810, 126
        %v1824 = vpop.permute.xlu0 %1823
        %1825 = vrot.lane.b32.xlu0 %v1811, 126
        %v1826 = vpop.permute.xlu0 %1825
        %1827 = vrot.lane.b32.xlu0 %v1812, 126
        %v1828 = vpop.permute.xlu0 %1827
        %v1829 = vsel %vm363, %v1814, %v1816
        %v1830 = vsel %vm363, %v1816, %v1818
        %v1831 = vsel %vm363, %v1818, %v1820
        %v1832 = vsel %vm363, %v1822, %v1824
        %v1833 = vsel %vm363, %v1824, %v1826
        %v1834 = vsel %vm363, %v1826, %v1828
        %v1835 = vld [vmem:[%s5] sm:$0x3]
        %1837 = vst [vmem:[#allocation1] ss:$9 sm:$0xff] %v1835
        %v1838 = vld [vmem:[#allocation1] sm:$0xff]
        %v1840 = vld [vmem:[#allocation1 + $0x9] sm:$0xff]
        %1842 = vrot.lane.b32.xlu0 %v1838, 32
        %v1843 = vpop.permute.xlu0 %1842
        %1844 = vrot.lane.b32.xlu0 %v1840, 32
        %v1845 = vpop.permute.xlu0 %1844
        %v1846 = vsel %vm1032, %v1843, %v1845
        %1847 = vrot.lane.b32.xlu0 %v1670, 1
        %v1848 = vpop.permute.xlu0 %1847
        %1849 = vrot.lane.b32.xlu0 %v1671, 1
        %v1850 = vpop.permute.xlu0 %1849
        %1851 = vrot.lane.b32.xlu0 %v1672, 1
        %v1852 = vpop.permute.xlu0 %1851
        %1853 = vrot.lane.b32.xlu0 %v1673, 1
        %v1854 = vpop.permute.xlu0 %1853
        %1855 = vrot.lane.b32.xlu0 %v1674, 1
        %v1856 = vpop.permute.xlu0 %1855
        %1857 = vrot.lane.b32.xlu0 %v1675, 1
        %v1858 = vpop.permute.xlu0 %1857
        %1859 = vrot.lane.b32.xlu0 %v1676, 1
        %v1860 = vpop.permute.xlu0 %1859
        %1861 = vrot.lane.b32.xlu0 %v1677, 1
        %v1862 = vpop.permute.xlu0 %1861
        %1863 = vrot.lane.b32.xlu0 %v1766, 1
        %v1864 = vpop.permute.xlu0 %1863
        %1865 = vrot.lane.b32.xlu0 %v1777, 1
        %v1866 = vpop.permute.xlu0 %1865
        %1867 = vrot.lane.b32.xlu0 %v1778, 1
        %v1868 = vpop.permute.xlu0 %1867
        %1869 = vrot.lane.b32.xlu0 %v1770, 1
        %v1870 = vpop.permute.xlu0 %1869
        %1871 = vrot.lane.b32.xlu0 %v1772, 1
        %v1872 = vpop.permute.xlu0 %1871
        %1873 = vrot.lane.b32.xlu0 %v1779, 1
        %v1874 = vpop.permute.xlu0 %1873
        %1875 = vrot.lane.b32.xlu0 %v1780, 1
        %v1876 = vpop.permute.xlu0 %1875
        %1877 = vrot.lane.b32.xlu0 %v1776, 1
        %v1878 = vpop.permute.xlu0 %1877
        %1879 = vrot.lane.b32.xlu0 %v1814, 1
        %v1880 = vpop.permute.xlu0 %1879
        %1881 = vrot.lane.b32.xlu0 %v1829, 1
        %v1882 = vpop.permute.xlu0 %1881
        %1883 = vrot.lane.b32.xlu0 %v1830, 1
        %v1884 = vpop.permute.xlu0 %1883
        %1885 = vrot.lane.b32.xlu0 %v1831, 1
        %v1886 = vpop.permute.xlu0 %1885
        %1887 = vrot.lane.b32.xlu0 %v1822, 1
        %v1888 = vpop.permute.xlu0 %1887
        %1889 = vrot.lane.b32.xlu0 %v1832, 1
        %v1890 = vpop.permute.xlu0 %1889
        %1891 = vrot.lane.b32.xlu0 %v1833, 1
        %v1892 = vpop.permute.xlu0 %1891
        %1893 = vrot.lane.b32.xlu0 %v1834, 1
        %v1894 = vpop.permute.xlu0 %1893
        %v1895 = vsel %vm1083, %v1848, %v1850
        %v1896 = vsel %vm1083, %v1850, %v1852
        %v1897 = vsel %vm1083, %v1852, %v1854
        %v1898 = vsel %vm1083, %v1856, %v1858
        %v1899 = vsel %vm1083, %v1858, %v1860
        %v1900 = vsel %vm1083, %v1860, %v1862
        %v1901 = vsel %vm1083, %v1864, %v1866
        %v1902 = vsel %vm1083, %v1866, %v1868
        %v1903 = vsel %vm1083, %v1868, %v1870
        %v1904 = vsel %vm1083, %v1872, %v1874
        %v1905 = vsel %vm1083, %v1874, %v1876
        %v1906 = vsel %vm1083, %v1876, %v1878
        %v1907 = vsel %vm1083, %v1880, %v1882
        %v1908 = vsel %vm1083, %v1882, %v1884
        %v1909 = vsel %vm1083, %v1884, %v1886
        %v1910 = vsel %vm1083, %v1888, %v1890
        %v1911 = vsel %vm1083, %v1890, %v1892
        %v1912 = vsel %vm1083, %v1892, %v1894
        %v1932 = vsel %vm1120, %v1846, 0
        %1934 = vmatpush.bf16.msra.mxu0 0
        %1935 = vmatpush.bf16.msra.mxu0 0
        %1936 = vmatpush.bf16.msra.mxu0 %v1910
        %1937 = vmatpush.bf16.msra.mxu0 %v1907
        %1938 = vmatpush.bf16.msra.mxu0 %v1904
        %1939 = vmatpush.bf16.msra.mxu0 %v1901
        %1940 = vmatpush.bf16.msra.mxu0 %v1898
        %1941 = vmatpush.bf16.msra.mxu0 %v1895
        %1942 = vmatmul.bf16.gmra.mxu0 %v1932
        %v1943 = vpop.f32.mrf.mxu0
        %v1944 = vadd.f32 0.0, %v1943
        %v1945 = vpop.f32.mrf.mxu0
        %1946 = vdwg.mxu0
        %1947 = vmatpush.bf16.msra.mxu0 0
        %1948 = vmatpush.bf16.msra.mxu0 0
        %1949 = vmatpush.bf16.msra.mxu0 %v1911
        %1950 = vmatpush.bf16.msra.mxu0 %v1908
        %1951 = vmatpush.bf16.msra.mxu0 %v1905
        %1952 = vmatpush.bf16.msra.mxu0 %v1902
        %1953 = vmatpush.bf16.msra.mxu0 %v1899
        %1954 = vmatpush.bf16.msra.mxu0 %v1896
        %1955 = vmatmul.bf16.gmra.mxu0 %v1932
        %v1956 = vpop.f32.mrf.mxu0
        %v1957 = vadd.f32 0.0, %v1956
        %v1958 = vpop.f32.mrf.mxu0
        %1959 = vdwg.mxu0
        %1960 = vmatpush.bf16.msra.mxu0 0
        %1961 = vmatpush.bf16.msra.mxu0 0
        %1962 = vmatpush.bf16.msra.mxu0 %v1912
        %1963 = vmatpush.bf16.msra.mxu0 %v1909
        %1964 = vmatpush.bf16.msra.mxu0 %v1906
        %1965 = vmatpush.bf16.msra.mxu0 %v1903
        %1966 = vmatpush.bf16.msra.mxu0 %v1900
        %1967 = vmatpush.bf16.msra.mxu0 %v1897
        %1968 = vmatmul.bf16.gmra.mxu0 %v1932
        %v1969 = vpop.f32.mrf.mxu0
        %v1970 = vadd.f32 0.0, %v1969
        %v1971 = vpop.f32.mrf.mxu0
        %1972 = vdwg.mxu0
        %1973 = vrot.lane.b32.xlu0 %v1670, 19
        %v1974 = vpop.permute.xlu0 %1973
        %1975 = vrot.lane.b32.xlu0 %v1671, 19
        %v1976 = vpop.permute.xlu0 %1975
        %1977 = vrot.lane.b32.xlu0 %v1672, 19
        %v1978 = vpop.permute.xlu0 %1977
        %1979 = vrot.lane.b32.xlu0 %v1673, 19
        %v1980 = vpop.permute.xlu0 %1979
        %1981 = vrot.lane.b32.xlu0 %v1674, 19
        %v1982 = vpop.permute.xlu0 %1981
        %1983 = vrot.lane.b32.xlu0 %v1675, 19
        %v1984 = vpop.permute.xlu0 %1983
        %1985 = vrot.lane.b32.xlu0 %v1676, 19
        %v1986 = vpop.permute.xlu0 %1985
        %1987 = vrot.lane.b32.xlu0 %v1677, 19
        %v1988 = vpop.permute.xlu0 %1987
        %1989 = vrot.lane.b32.xlu0 %v1694, 19
        %v1990 = vpop.permute.xlu0 %1989
        %1991 = vrot.lane.b32.xlu0 %v1695, 19
        %v1992 = vpop.permute.xlu0 %1991
        %1993 = vrot.lane.b32.xlu0 %v1696, 19
        %v1994 = vpop.permute.xlu0 %1993
        %1995 = vrot.lane.b32.xlu0 %v1685, 19
        %v1996 = vpop.permute.xlu0 %1995
        %1997 = vrot.lane.b32.xlu0 %v1697, 19
        %v1998 = vpop.permute.xlu0 %1997
        %1999 = vrot.lane.b32.xlu0 %v1698, 19
        %v2000 = vpop.permute.xlu0 %1999
        %2001 = vrot.lane.b32.xlu0 %v1699, 19
        %v2002 = vpop.permute.xlu0 %2001
        %2003 = vrot.lane.b32.xlu0 %v1693, 19
        %v2004 = vpop.permute.xlu0 %2003
        %2005 = vrot.lane.b32.xlu0 %v1716, 19
        %v2006 = vpop.permute.xlu0 %2005
        %2007 = vrot.lane.b32.xlu0 %v1717, 19
        %v2008 = vpop.permute.xlu0 %2007
        %2009 = vrot.lane.b32.xlu0 %v1718, 19
        %v2010 = vpop.permute.xlu0 %2009
        %2011 = vrot.lane.b32.xlu0 %v1707, 19
        %v2012 = vpop.permute.xlu0 %2011
        %2013 = vrot.lane.b32.xlu0 %v1719, 19
        %v2014 = vpop.permute.xlu0 %2013
        %2015 = vrot.lane.b32.xlu0 %v1720, 19
        %v2016 = vpop.permute.xlu0 %2015
        %2017 = vrot.lane.b32.xlu0 %v1721, 19
        %v2018 = vpop.permute.xlu0 %2017
        %2019 = vrot.lane.b32.xlu0 %v1715, 19
        %v2020 = vpop.permute.xlu0 %2019
        %v2021 = vsel %vm669, %v1974, %v1976
        %v2022 = vsel %vm669, %v1976, %v1978
        %v2023 = vsel %vm669, %v1978, %v1980
        %v2024 = vsel %vm669, %v1982, %v1984
        %v2025 = vsel %vm669, %v1984, %v1986
        %v2026 = vsel %vm669, %v1986, %v1988
        %v2027 = vsel %vm669, %v1990, %v1992
        %v2028 = vsel %vm669, %v1992, %v1994
        %v2029 = vsel %vm669, %v1994, %v1996
        %v2030 = vsel %vm669, %v1998, %v2000
        %v2031 = vsel %vm669, %v2000, %v2002
        %v2032 = vsel %vm669, %v2002, %v2004
        %v2033 = vsel %vm669, %v2006, %v2008
        %v2034 = vsel %vm669, %v2008, %v2010
        %v2035 = vsel %vm669, %v2010, %v2012
        %v2036 = vsel %vm669, %v2014, %v2016
        %v2037 = vsel %vm669, %v2016, %v2018
        %v2038 = vsel %vm669, %v2018, %v2020
        %v2058 = vsel %vm1120, %v1722, 0
        %2060 = vmatpush.bf16.msra.mxu0 0
        %2061 = vmatpush.bf16.msra.mxu0 0
        %2062 = vmatpush.bf16.msra.mxu0 %v2036
        %2063 = vmatpush.bf16.msra.mxu0 %v2033
        %2064 = vmatpush.bf16.msra.mxu0 %v2030
        %2065 = vmatpush.bf16.msra.mxu0 %v2027
        %2066 = vmatpush.bf16.msra.mxu0 %v2024
        %2067 = vmatpush.bf16.msra.mxu0 %v2021
        %2068 = vmatmul.bf16.gmra.mxu0 %v2058
        %v2069 = vpop.f32.mrf.mxu0
        %v2070 = vadd.f32 %v1944, %v2069
        %v2071 = vpop.f32.mrf.mxu0
        %2072 = vdwg.mxu0
        %2073 = vmatpush.bf16.msra.mxu0 0
        %2074 = vmatpush.bf16.msra.mxu0 0
        %2075 = vmatpush.bf16.msra.mxu0 %v2037
        %2076 = vmatpush.bf16.msra.mxu0 %v2034
        %2077 = vmatpush.bf16.msra.mxu0 %v2031
        %2078 = vmatpush.bf16.msra.mxu0 %v2028
        %2079 = vmatpush.bf16.msra.mxu0 %v2025
        %2080 = vmatpush.bf16.msra.mxu0 %v2022
        %2081 = vmatmul.bf16.gmra.mxu0 %v2058
        %v2082 = vpop.f32.mrf.mxu0
        %v2083 = vadd.f32 %v1957, %v2082
        %v2084 = vpop.f32.mrf.mxu0
        %2085 = vdwg.mxu0
        %2086 = vmatpush.bf16.msra.mxu0 0
        %2087 = vmatpush.bf16.msra.mxu0 0
        %2088 = vmatpush.bf16.msra.mxu0 %v2038
        %2089 = vmatpush.bf16.msra.mxu0 %v2035
        %2090 = vmatpush.bf16.msra.mxu0 %v2032
        %2091 = vmatpush.bf16.msra.mxu0 %v2029
        %2092 = vmatpush.bf16.msra.mxu0 %v2026
        %2093 = vmatpush.bf16.msra.mxu0 %v2023
        %2094 = vmatmul.bf16.gmra.mxu0 %v2058
        %v2095 = vpop.f32.mrf.mxu0
        %v2096 = vadd.f32 %v1970, %v2095
        %v2097 = vpop.f32.mrf.mxu0
        %2098 = vdwg.mxu0
        %v2099 = vld [vmem:[#allocation3 + $0x4] sm:$0xff]
        %v2100 = vld [vmem:[#allocation3 + $0xc] sm:$0xff]
        %v2101 = vld [vmem:[#allocation3 + $0x18] sm:$0xff]
        %v2102 = vld [vmem:[#allocation3 + $0x20] sm:$0xff]
        %v2103 = vld [vmem:[#allocation3 + $0x2c] sm:$0xff]
        %v2104 = vld [vmem:[#allocation3 + $0x34] sm:$0xff]
        %v2105 = vld [vmem:[#allocation3 + $0x40] sm:$0xff]
        %v2106 = vld [vmem:[#allocation3 + $0x48] sm:$0xff]
        %v2115 = vunpack.c.l.b16 %v2099
        %v2116 = vunpack.c.h.b16 %v2099
        %v2117 = vunpack.c.l.b16 %v2100
        %v2118 = vunpack.c.h.b16 %v2100
        %v2119 = vunpack.c.l.b16 %v2101
        %v2120 = vunpack.c.h.b16 %v2101
        %v2121 = vunpack.c.l.b16 %v2102
        %v2122 = vunpack.c.h.b16 %v2102
        %v2123 = vunpack.c.l.b16 %v2103
        %v2124 = vunpack.c.h.b16 %v2103
        %v2125 = vunpack.c.l.b16 %v2104
        %v2126 = vunpack.c.h.b16 %v2104
        %v2127 = vunpack.c.l.b16 %v2105
        %v2128 = vunpack.c.h.b16 %v2105
        %v2129 = vunpack.c.l.b16 %v2106
        %v2130 = vunpack.c.h.b16 %v2106
        %v2131 = vpack.c.b16 %v2119, %v2115
        %v2132 = vpack.c.b16 %v2120, %v2116
        %v2133 = vpack.c.b16 %v2121, %v2117
        %v2134 = vpack.c.b16 %v2122, %v2118
        %v2135 = vpack.c.b16 %v2127, %v2123
        %v2136 = vpack.c.b16 %v2128, %v2124
        %v2137 = vpack.c.b16 %v2129, %v2125
        %v2138 = vpack.c.b16 %v2130, %v2126
        %2139 = vrot.lane.b32.xlu0 %v2131, 127
        %v2140 = vpop.permute.xlu0 %2139
        %2141 = vrot.lane.b32.xlu0 %v2132, 127
        %v2142 = vpop.permute.xlu0 %2141
        %2143 = vrot.lane.b32.xlu0 %v2133, 127
        %v2144 = vpop.permute.xlu0 %2143
        %2145 = vrot.lane.b32.xlu0 %v2134, 127
        %v2146 = vpop.permute.xlu0 %2145
        %2147 = vrot.lane.b32.xlu0 %v2135, 127
        %v2148 = vpop.permute.xlu0 %2147
        %2149 = vrot.lane.b32.xlu0 %v2136, 127
        %v2150 = vpop.permute.xlu0 %2149
        %2151 = vrot.lane.b32.xlu0 %v2137, 127
        %v2152 = vpop.permute.xlu0 %2151
        %2153 = vrot.lane.b32.xlu0 %v2138, 127
        %v2154 = vpop.permute.xlu0 %2153
        %v2155 = vsel %vm337, %v2140, %v2142
        %v2156 = vsel %vm337, %v2142, %v2144
        %v2157 = vsel %vm337, %v2144, %v2146
        %v2158 = vsel %vm337, %v2148, %v2150
        %v2159 = vsel %vm337, %v2150, %v2152
        %v2160 = vsel %vm337, %v2152, %v2154
        %2161 = vrot.lane.b32.xlu0 %v2131, 126
        %v2162 = vpop.permute.xlu0 %2161
        %2163 = vrot.lane.b32.xlu0 %v2132, 126
        %v2164 = vpop.permute.xlu0 %2163
        %2165 = vrot.lane.b32.xlu0 %v2133, 126
        %v2166 = vpop.permute.xlu0 %2165
        %2167 = vrot.lane.b32.xlu0 %v2134, 126
        %v2168 = vpop.permute.xlu0 %2167
        %2169 = vrot.lane.b32.xlu0 %v2135, 126
        %v2170 = vpop.permute.xlu0 %2169
        %2171 = vrot.lane.b32.xlu0 %v2136, 126
        %v2172 = vpop.permute.xlu0 %2171
        %2173 = vrot.lane.b32.xlu0 %v2137, 126
        %v2174 = vpop.permute.xlu0 %2173
        %2175 = vrot.lane.b32.xlu0 %v2138, 126
        %v2176 = vpop.permute.xlu0 %2175
        %v2177 = vsel %vm363, %v2162, %v2164
        %v2178 = vsel %vm363, %v2164, %v2166
        %v2179 = vsel %vm363, %v2166, %v2168
        %v2180 = vsel %vm363, %v2170, %v2172
        %v2181 = vsel %vm363, %v2172, %v2174
        %v2182 = vsel %vm363, %v2174, %v2176
        %v2183 = vld [vmem:[%s5 + $0x1] sm:$0x3]
        %2185 = vst [vmem:[#allocation1] ss:$9 sm:$0xff] %v2183
        %v2186 = vld [vmem:[#allocation1] sm:$0xff]
        %v2188 = vld [vmem:[#allocation1 + $0x9] sm:$0xff]
        %2190 = vrot.lane.b32.xlu0 %v2186, 64
        %v2191 = vpop.permute.xlu0 %2190
        %2192 = vrot.lane.b32.xlu0 %v2188, 64
        %v2193 = vpop.permute.xlu0 %2192
        %v2194 = vsel %vm1391, %v2191, %v2193
        %2195 = vrot.lane.b32.xlu0 %v2131, 111
        %v2196 = vpop.permute.xlu0 %2195
        %2197 = vrot.lane.b32.xlu0 %v2132, 111
        %v2198 = vpop.permute.xlu0 %2197
        %2199 = vrot.lane.b32.xlu0 %v2133, 111
        %v2200 = vpop.permute.xlu0 %2199
        %2201 = vrot.lane.b32.xlu0 %v2134, 111
        %v2202 = vpop.permute.xlu0 %2201
        %2203 = vrot.lane.b32.xlu0 %v2135, 111
        %v2204 = vpop.permute.xlu0 %2203
        %2205 = vrot.lane.b32.xlu0 %v2136, 111
        %v2206 = vpop.permute.xlu0 %2205
        %2207 = vrot.lane.b32.xlu0 %v2137, 111
        %v2208 = vpop.permute.xlu0 %2207
        %2209 = vrot.lane.b32.xlu0 %v2138, 111
        %v2210 = vpop.permute.xlu0 %2209
        %2211 = vrot.lane.b32.xlu0 %v2155, 111
        %v2212 = vpop.permute.xlu0 %2211
        %2213 = vrot.lane.b32.xlu0 %v2156, 111
        %v2214 = vpop.permute.xlu0 %2213
        %2215 = vrot.lane.b32.xlu0 %v2157, 111
        %v2216 = vpop.permute.xlu0 %2215
        %2217 = vrot.lane.b32.xlu0 %v2146, 111
        %v2218 = vpop.permute.xlu0 %2217
        %2219 = vrot.lane.b32.xlu0 %v2158, 111
        %v2220 = vpop.permute.xlu0 %2219
        %2221 = vrot.lane.b32.xlu0 %v2159, 111
        %v2222 = vpop.permute.xlu0 %2221
        %2223 = vrot.lane.b32.xlu0 %v2160, 111
        %v2224 = vpop.permute.xlu0 %2223
        %2225 = vrot.lane.b32.xlu0 %v2154, 111
        %v2226 = vpop.permute.xlu0 %2225
        %2227 = vrot.lane.b32.xlu0 %v2177, 111
        %v2228 = vpop.permute.xlu0 %2227
        %2229 = vrot.lane.b32.xlu0 %v2178, 111
        %v2230 = vpop.permute.xlu0 %2229
        %2231 = vrot.lane.b32.xlu0 %v2179, 111
        %v2232 = vpop.permute.xlu0 %2231
        %2233 = vrot.lane.b32.xlu0 %v2168, 111
        %v2234 = vpop.permute.xlu0 %2233
        %2235 = vrot.lane.b32.xlu0 %v2180, 111
        %v2236 = vpop.permute.xlu0 %2235
        %2237 = vrot.lane.b32.xlu0 %v2181, 111
        %v2238 = vpop.permute.xlu0 %2237
        %2239 = vrot.lane.b32.xlu0 %v2182, 111
        %v2240 = vpop.permute.xlu0 %2239
        %2241 = vrot.lane.b32.xlu0 %v2176, 111
        %v2242 = vpop.permute.xlu0 %2241
        %v2243 = vsel %vm1442, %v2196, %v2198
        %v2244 = vsel %vm1442, %v2198, %v2200
        %v2245 = vsel %vm1442, %v2200, %v2202
        %v2246 = vsel %vm1442, %v2204, %v2206
        %v2247 = vsel %vm1442, %v2206, %v2208
        %v2248 = vsel %vm1442, %v2208, %v2210
        %v2249 = vsel %vm1442, %v2212, %v2214
        %v2250 = vsel %vm1442, %v2214, %v2216
        %v2251 = vsel %vm1442, %v2216, %v2218
        %v2252 = vsel %vm1442, %v2220, %v2222
        %v2253 = vsel %vm1442, %v2222, %v2224
        %v2254 = vsel %vm1442, %v2224, %v2226
        %v2255 = vsel %vm1442, %v2228, %v2230
        %v2256 = vsel %vm1442, %v2230, %v2232
        %v2257 = vsel %vm1442, %v2232, %v2234
        %v2258 = vsel %vm1442, %v2236, %v2238
        %v2259 = vsel %vm1442, %v2238, %v2240
        %v2260 = vsel %vm1442, %v2240, %v2242
        %v2280 = vsel %vm1120, %v2194, 0
        %2282 = vmatpush.bf16.msra.mxu0 0
        %2283 = vmatpush.bf16.msra.mxu0 0
        %2284 = vmatpush.bf16.msra.mxu0 %v2258
        %2285 = vmatpush.bf16.msra.mxu0 %v2255
        %2286 = vmatpush.bf16.msra.mxu0 %v2252
        %2287 = vmatpush.bf16.msra.mxu0 %v2249
        %2288 = vmatpush.bf16.msra.mxu0 %v2246
        %2289 = vmatpush.bf16.msra.mxu0 %v2243
        %2290 = vmatmul.bf16.gmra.mxu0 %v2280
        %v2291 = vpop.f32.mrf.mxu0
        %v2292 = vadd.f32 0.0, %v2291
        %v2293 = vpop.f32.mrf.mxu0
        %2294 = vdwg.mxu0
        %2295 = vmatpush.bf16.msra.mxu0 0
        %2296 = vmatpush.bf16.msra.mxu0 0
        %2297 = vmatpush.bf16.msra.mxu0 %v2259
        %2298 = vmatpush.bf16.msra.mxu0 %v2256
        %2299 = vmatpush.bf16.msra.mxu0 %v2253
        %2300 = vmatpush.bf16.msra.mxu0 %v2250
        %2301 = vmatpush.bf16.msra.mxu0 %v2247
        %2302 = vmatpush.bf16.msra.mxu0 %v2244
        %2303 = vmatmul.bf16.gmra.mxu0 %v2280
        %v2304 = vpop.f32.mrf.mxu0
        %v2305 = vadd.f32 0.0, %v2304
        %v2306 = vpop.f32.mrf.mxu0
        %2307 = vdwg.mxu0
        %2308 = vmatpush.bf16.msra.mxu0 0
        %2309 = vmatpush.bf16.msra.mxu0 0
        %2310 = vmatpush.bf16.msra.mxu0 %v2260
        %2311 = vmatpush.bf16.msra.mxu0 %v2257
        %2312 = vmatpush.bf16.msra.mxu0 %v2254
        %2313 = vmatpush.bf16.msra.mxu0 %v2251
        %2314 = vmatpush.bf16.msra.mxu0 %v2248
        %2315 = vmatpush.bf16.msra.mxu0 %v2245
        %2316 = vmatmul.bf16.gmra.mxu0 %v2280
        %v2317 = vpop.f32.mrf.mxu0
        %v2318 = vadd.f32 0.0, %v2317
        %v2319 = vpop.f32.mrf.mxu0
        %2320 = vdwg.mxu0
        %v2321 = vadd.f32 %v2070, %v2292
        %v2322 = vadd.f32 %v2083, %v2305
        %v2323 = vadd.f32 %v2096, %v2318
        %v2324 = vld [vmem:[#allocation4] sm:$0x1]
        %2326 = vset.pattern.permute.xlu0 0
        %2327 = vperm.xlu0 %2326, %v2324
        %v2328 = vpop.permute.xlu0 %2327
        %v2330 = vperm.slane %v2328, 0
        %v2331 = vadd.f32 %v2321, %v2330
        %v2332 = vadd.f32 %v2322, %v2330
        %v2333 = vadd.f32 %v2323, %v2330
        %v2337 = vrot.slane %v2332, 7
        %v2338 = vrot.slane %v2333, 6
        %v2339 = vsel %vm534, %v2331, %v2337
        %v2340 = vsel %vm558, %v2339, %v2338
        %v2342 = vlaneseq
        %vm2343 = vcmp.ge.s32.totalorder %v2342, 0
        %vm2344 = vcmp.lt.s32.totalorder %v2342, 384
        %vm2345 = vmand %vm2343, %vm2344
        %2346 = vst.msk [vmem:[%s298] sm:$0x7] %vm2345, %v2340
        %s2347 = sand.u32 %s205, 1
        %s2348 = scalar_lea.sflag [#allocation6], %s2347
        %s2349 = sand.u32 %s205, 1
        %s2350 = smul.addr %s2349, 3
        %s2351 = scalar_lea.vmem [#allocation5], %s2350
        // Predicated region
        $region53: #{tpu_custom_call.1} parent=51 // pred_check
          %p2352 = pneg %p215
        $region54: #{tpu_custom_call.1} parent=51 // pred_check_branch
          %2354 = sbr.rel (%p2352) target = $region56
        $region55: #{tpu_custom_call.1} parent=51 // pred_region
          %2356 = vsyncadd %s2348, 0
          %s2357 = smul.addr %s24, 3
          %s2358 = scalar_lea.hbm %s8, %s2357
          %s2360 = sshll.u32 %s2351, 4
          %s2361 = int_to_ptr.vmem [resolvable:$true] %s2360
          %s2362 = sshll.u32 %s2358, 4
          %s2363 = int_to_ptr.hbm [resolvable:$true] %s2362
          %2365 = dma.vmem_to_hbm [thread:$0]  %s2361, 48, %s2363, %s2348
        $region56: #{tpu_custom_call.1} parent=51 // pred_fallthru
          _
      $region52: #{tpu_custom_call.1} parent=5 // pred_fallthru
        _
      %p2366 = scmp.le.s32.totalorder 2, %s19
      // Predicated region
      $region57: #{tpu_custom_call.1} parent=5 // pred_check
        %p2367 = pneg %p2366
      $region58: #{tpu_custom_call.1} parent=5 // pred_check_branch
        %2369 = sbr.rel (%p2367) target = $region60
      $region59: #{tpu_custom_call.1} parent=5 // pred_region
        %s2370 = ssub.s32 %s19, 2
        // Predicated region
        $region61: #{tpu_custom_call.1} parent=59 // pred_check
          %p2371 = pneg %p221
        $region62: #{tpu_custom_call.1} parent=59 // pred_check_branch
          %2373 = sbr.rel (%p2371) target = $region64
        $region63: #{tpu_custom_call.1} parent=59 // pred_region
          %s2374 = sand.u32 %s206, 1
          %s2375 = scalar_lea.sflag [#allocation6], %s2374
          %s2376 = sand.u32 %s206, 1
          %s2377 = smul.addr %s2376, 3
          %s2378 = scalar_lea.vmem [#allocation5], %s2377
          %2380 = dma.done %s2375, 48
        $region64: #{tpu_custom_call.1} parent=59 // pred_fallthru
          _
      $region60: #{tpu_custom_call.1} parent=5 // pred_fallthru
        _
    $region6: #{tpu_custom_call.1} parent=1 // loop_footer
      %s23 = sadd.s32 1, %s19
    $region7: #{tpu_custom_call.1} parent=1 // loop_footer_branch
      %18 = sbr.rel target = $region3
    $region8: #{tpu_custom_call.1} parent=1 // loop_exit
      _
    %2381 = vsyncpa [#allocation6], 1
    %s2382 = scalar_lea.sflag [#allocation6], 1
    %2383 = vsyncpa %s2382, 1

</llo_original>
